<compile_context>
chip_gen: v6e
topology: v6e:2x2x1
jax: 0.10.0
libtpu: 0.0.40
codegen_flags: <defaults>
</compile_context>

<pallas_src>
import functools

import jax
import jax.numpy as jnp
from jax.experimental import pallas as pl
from jax.experimental.pallas import tpu as pltpu


K_IN = 28 * 28          # 784
K_PAD = 896             # 784 padded up to 7 * 128 (lane-dense contraction)
N_OUT = 10
N_OUT_PAD = 128         # lane-dense output store
NEG_BIG = -1e30         # padded-logit bias: exp() underflows to exactly 0


def _round_up(n, m):
    return ((n + m - 1) // m) * m


def _ffn_kernel(x_ref, w1_ref, b1_ref, w2_ref, b2_ref, w3_ref, b3_ref,
                w4_ref, b4_ref, out_ref, *, compute_dtype):
    """One batch tile: 3x (Linear+ReLU) + Linear + log_softmax, all resident in VMEM."""
    cd = compute_dtype
    x = x_ref[...].astype(cd)                                   # (TB, 896)

    h = jnp.dot(x, w1_ref[...].astype(cd),
                preferred_element_type=jnp.float32) + b1_ref[...]
    h = jnp.maximum(h, 0.0)                                     # (TB, 64)

    h = jnp.dot(h.astype(cd), w2_ref[...].astype(cd),
                preferred_element_type=jnp.float32) + b2_ref[...]
    h = jnp.maximum(h, 0.0)                                     # (TB, 64)

    h = jnp.dot(h.astype(cd), w3_ref[...].astype(cd),
                preferred_element_type=jnp.float32) + b3_ref[...]
    h = jnp.maximum(h, 0.0)                                     # (TB, 64)

    logits = jnp.dot(h.astype(cd), w4_ref[...].astype(cd),
                     preferred_element_type=jnp.float32) + b4_ref[...]   # (TB, 128)

    # log_softmax across the padded 128 lanes; columns >= 10 carry bias -1e30, so
    # exp(shifted) there is exactly 0 and the valid columns match dim=10 log_softmax.
    m = jnp.max(logits, axis=-1, keepdims=True)
    shifted = logits - m
    lse = jnp.log(jnp.sum(jnp.exp(shifted), axis=-1, keepdims=True))
    out_ref[...] = (shifted - lse).astype(out_ref.dtype)        # (TB, 128)


@functools.partial(jax.jit, static_argnames=("batch_tile", "compute_dtype"))
def feed_forward_network(x, params, batch_tile=512, compute_dtype=jnp.float32):
    """x: (B, 784) f32; params: w1..w4 as (in, out), b1..b4 as (1, out). Returns (B, 10)."""
    B, D = x.shape
    assert D == K_IN

    # --- pad contraction dim 784 -> 896 (zero rows/cols; exact, no numeric change) ---
    xp = jnp.pad(x, ((0, 0), (0, K_PAD - D)))
    w1 = jnp.pad(params["w1"], ((0, K_PAD - D), (0, 0)))
    b1 = params["b1"]
    w2, b2 = params["w2"], params["b2"]
    w3, b3 = params["w3"], params["b3"]

    # --- pad output dim 10 -> 128 for a lane-dense final matmul and unmasked store ---
    w4 = jnp.pad(params["w4"], ((0, 0), (0, N_OUT_PAD - N_OUT)))
    b4 = jnp.pad(params["b4"], ((0, 0), (0, N_OUT_PAD - N_OUT)),
                 constant_values=NEG_BIG)

    # --- batch tiling: clamp tile to (sublane-rounded) batch, pad batch to a multiple ---
    TB = min(batch_tile, _round_up(B, 8))
    Bp = _round_up(B, TB)
    if Bp != B:
        xp = jnp.pad(xp, ((0, Bp - B), (0, 0)))

    kernel = functools.partial(_ffn_kernel, compute_dtype=compute_dtype)

    def const2d(shape):
        # Weights/biases: same (only) block for every batch tile.
        return pl.BlockSpec(shape, lambda i: (0, 0))

    out = pl.pallas_call(
        kernel,
        out_shape=jax.ShapeDtypeStruct((Bp, N_OUT_PAD), jnp.float32),
        grid_spec=pltpu.PrefetchScalarGridSpec(
            num_scalar_prefetch=0,
            grid=(Bp // TB,),
            in_specs=[
                pl.BlockSpec((TB, K_PAD), lambda i: (i, 0)),   # streaming x tile
                const2d(w1.shape), const2d(b1.shape),
                const2d(w2.shape), const2d(b2.shape),
                const2d(w3.shape), const2d(b3.shape),
                const2d(w4.shape), const2d(b4.shape),
            ],
            out_specs=pl.BlockSpec((TB, N_OUT_PAD), lambda i: (i, 0)),
        ),
        compiler_params=pltpu.CompilerParams(
            dimension_semantics=("parallel",)),   # batch tiles shard across TCs (v7x)
    )(xp, w1, b1, w2, b2, w3, b3, w4, b4)

    return out[:B, :N_OUT]


def init_params(key):
    """PyTorch nn.Linear(in, out) default init, stored as W:(in,out), b:(1,out)."""
    dims = [(K_IN, 64), (64, 64), (64, 64), (64, N_OUT)]
    params = {}
    keys = jax.random.split(key, len(dims))
    for idx, ((din, dout), k) in enumerate(zip(dims, keys), start=1):
        kw, kb = jax.random.split(k)
        bound = 1.0 / jnp.sqrt(din)
        params[f"w{idx}"] = jax.random.uniform(
            kw, (din, dout), jnp.float32, minval=-bound, maxval=bound)
        params[f"b{idx}"] = jax.random.uniform(
            kb, (1, dout), jnp.float32, minval=-bound, maxval=bound)
    return params


def _reference(x, params):
    h = jnp.maximum(x @ params["w1"] + params["b1"], 0.0)
    h = jnp.maximum(h @ params["w2"] + params["b2"], 0.0)
    h = jnp.maximum(h @ params["w3"] + params["b3"], 0.0)
    logits = h @ params["w4"] + params["b4"]
    return jax.nn.log_softmax(logits, axis=1)


if __name__ == "__main__":
    key = jax.random.PRNGKey(0)
    k_params, k_x = jax.random.split(key)
    params = init_params(k_params)

    # Realistic MNIST-style batch; batch_tile=256 -> 2 grid steps (both v7x TCs busy).
    B = 512
    x = jax.random.normal(k_x, (B, K_IN), jnp.float32)
    out = jax.block_until_ready(feed_forward_network(x, params, batch_tile=256))
    ref = _reference(x, params)
    assert out.shape == (B, N_OUT)
    assert jnp.allclose(out, ref, atol=1e-5, rtol=1e-5)

    # Batch not divisible by the tile: exercises the cdiv/padding path.
    B2 = 100
    x2 = jax.random.normal(k_x, (B2, K_IN), jnp.float32)
    out2 = jax.block_until_ready(feed_forward_network(x2, params))
    assert out2.shape == (B2, N_OUT)
    assert jnp.allclose(out2, _reference(x2, params), atol=1e-5, rtol=1e-5)

    # TODO(synk): on v5e, pass compute_dtype=jnp.bfloat16 to use the bf16 MXU path
    # (f32 matmul is multi-pass there); f32 is kept as the default to match PyTorch.
    print("KERNEL_OK")
</pallas_src>

<mosaic_0001>
module attributes {stable_mosaic.version = 11 : i64} {
  func.func @_ffn_kernel(%arg0: i32, %arg1: memref<256x896xf32, #tpu.memory_space<vmem>>, %arg2: memref<896x64xf32, #tpu.memory_space<vmem>>, %arg3: memref<1x64xf32, #tpu.memory_space<vmem>>, %arg4: memref<64x64xf32, #tpu.memory_space<vmem>>, %arg5: memref<1x64xf32, #tpu.memory_space<vmem>>, %arg6: memref<64x64xf32, #tpu.memory_space<vmem>>, %arg7: memref<1x64xf32, #tpu.memory_space<vmem>>, %arg8: memref<64x128xf32, #tpu.memory_space<vmem>>, %arg9: memref<1x128xf32, #tpu.memory_space<vmem>>, %arg10: memref<256x128xf32, #tpu.memory_space<vmem>>) attributes {dimension_semantics = [#tpu.dimension_semantics<parallel>], iteration_bounds = array<i64: 2>, scalar_prefetch = 0 : i64, scratch_operands = 0 : i64, tpu.core_type = #tpu.core_type<tc>, window_params = [{transform_indices = @transform_0, window_bounds = array<i64: 256, 896>}, {pipeline_mode = #tpu.pipeline_mode<synchronous>, transform_indices = @transform_1, window_bounds = array<i64: 896, 64>}, {pipeline_mode = #tpu.pipeline_mode<synchronous>, transform_indices = @transform_2, window_bounds = array<i64: 1, 64>}, {pipeline_mode = #tpu.pipeline_mode<synchronous>, transform_indices = @transform_3, window_bounds = array<i64: 64, 64>}, {pipeline_mode = #tpu.pipeline_mode<synchronous>, transform_indices = @transform_4, window_bounds = array<i64: 1, 64>}, {pipeline_mode = #tpu.pipeline_mode<synchronous>, transform_indices = @transform_5, window_bounds = array<i64: 64, 64>}, {pipeline_mode = #tpu.pipeline_mode<synchronous>, transform_indices = @transform_6, window_bounds = array<i64: 1, 64>}, {pipeline_mode = #tpu.pipeline_mode<synchronous>, transform_indices = @transform_7, window_bounds = array<i64: 64, 128>}, {pipeline_mode = #tpu.pipeline_mode<synchronous>, transform_indices = @transform_8, window_bounds = array<i64: 1, 128>}, {transform_indices = @transform_9, window_bounds = array<i64: 256, 128>}]} {
    %c0 = arith.constant 0 : index
    %c0_0 = arith.constant 0 : index
    %0 = vector.load %arg1[%c0, %c0_0] : memref<256x896xf32, #tpu.memory_space<vmem>>, vector<256x896xf32>
    %c0_1 = arith.constant 0 : index
    %c0_2 = arith.constant 0 : index
    %1 = vector.load %arg2[%c0_1, %c0_2] : memref<896x64xf32, #tpu.memory_space<vmem>>, vector<896x64xf32>
    %cst = arith.constant dense<0.000000e+00> : vector<256x64xf32>
    %2 = tpu.matmul %0, %1, %cst {dimension_numbers = #tpu.dot_dimension_numbers<[1], [0], [0], [1], [0, 0, 1, 1], [], []>} : vector<256x896xf32>, vector<896x64xf32>, vector<256x64xf32> -> vector<256x64xf32>
    %c0_3 = arith.constant 0 : index
    %c0_4 = arith.constant 0 : index
    %3 = vector.load %arg3[%c0_3, %c0_4] : memref<1x64xf32, #tpu.memory_space<vmem>>, vector<1x64xf32>
    %4 = vector.broadcast %3 : vector<1x64xf32> to vector<256x64xf32>
    %5 = arith.addf %2, %4 : vector<256x64xf32>
    %cst_5 = arith.constant 0.000000e+00 : f32
    %6 = vector.broadcast %cst_5 : f32 to vector<256x64xf32>
    %7 = arith.maximumf %5, %6 : vector<256x64xf32>
    %c0_6 = arith.constant 0 : index
    %c0_7 = arith.constant 0 : index
    %8 = vector.load %arg4[%c0_6, %c0_7] : memref<64x64xf32, #tpu.memory_space<vmem>>, vector<64x64xf32>
    %cst_8 = arith.constant dense<0.000000e+00> : vector<256x64xf32>
    %9 = tpu.matmul %7, %8, %cst_8 {dimension_numbers = #tpu.dot_dimension_numbers<[1], [0], [0], [1], [0, 0, 1, 1], [], []>} : vector<256x64xf32>, vector<64x64xf32>, vector<256x64xf32> -> vector<256x64xf32>
    %c0_9 = arith.constant 0 : index
    %c0_10 = arith.constant 0 : index
    %10 = vector.load %arg5[%c0_9, %c0_10] : memref<1x64xf32, #tpu.memory_space<vmem>>, vector<1x64xf32>
    %11 = vector.broadcast %10 : vector<1x64xf32> to vector<256x64xf32>
    %12 = arith.addf %9, %11 : vector<256x64xf32>
    %cst_11 = arith.constant 0.000000e+00 : f32
    %13 = vector.broadcast %cst_11 : f32 to vector<256x64xf32>
    %14 = arith.maximumf %12, %13 : vector<256x64xf32>
    %c0_12 = arith.constant 0 : index
    %c0_13 = arith.constant 0 : index
    %15 = vector.load %arg6[%c0_12, %c0_13] : memref<64x64xf32, #tpu.memory_space<vmem>>, vector<64x64xf32>
    %cst_14 = arith.constant dense<0.000000e+00> : vector<256x64xf32>
    %16 = tpu.matmul %14, %15, %cst_14 {dimension_numbers = #tpu.dot_dimension_numbers<[1], [0], [0], [1], [0, 0, 1, 1], [], []>} : vector<256x64xf32>, vector<64x64xf32>, vector<256x64xf32> -> vector<256x64xf32>
    %c0_15 = arith.constant 0 : index
    %c0_16 = arith.constant 0 : index
    %17 = vector.load %arg7[%c0_15, %c0_16] : memref<1x64xf32, #tpu.memory_space<vmem>>, vector<1x64xf32>
    %18 = vector.broadcast %17 : vector<1x64xf32> to vector<256x64xf32>
    %19 = arith.addf %16, %18 : vector<256x64xf32>
    %cst_17 = arith.constant 0.000000e+00 : f32
    %20 = vector.broadcast %cst_17 : f32 to vector<256x64xf32>
    %21 = arith.maximumf %19, %20 : vector<256x64xf32>
    %c0_18 = arith.constant 0 : index
    %c0_19 = arith.constant 0 : index
    %22 = vector.load %arg8[%c0_18, %c0_19] : memref<64x128xf32, #tpu.memory_space<vmem>>, vector<64x128xf32>
    %cst_20 = arith.constant dense<0.000000e+00> : vector<256x128xf32>
    %23 = tpu.matmul %21, %22, %cst_20 {dimension_numbers = #tpu.dot_dimension_numbers<[1], [0], [0], [1], [0, 0, 1, 1], [], []>} : vector<256x64xf32>, vector<64x128xf32>, vector<256x128xf32> -> vector<256x128xf32>
    %c0_21 = arith.constant 0 : index
    %c0_22 = arith.constant 0 : index
    %24 = vector.load %arg9[%c0_21, %c0_22] : memref<1x128xf32, #tpu.memory_space<vmem>>, vector<1x128xf32>
    %25 = vector.broadcast %24 : vector<1x128xf32> to vector<256x128xf32>
    %26 = arith.addf %23, %25 : vector<256x128xf32>
    %cst_23 = arith.constant dense<0xFF800000> : vector<256xf32>
    %27 = vector.multi_reduction <maximumf>, %26, %cst_23 [1] : vector<256x128xf32> to vector<256xf32>
    %28 = vector.shape_cast %27 : vector<256xf32> to vector<256x1xf32>
    %29 = vector.broadcast %28 : vector<256x1xf32> to vector<256x128xf32>
    %30 = arith.subf %26, %29 : vector<256x128xf32>
    %31 = math.exp %30 : vector<256x128xf32>
    %cst_24 = arith.constant dense<0.000000e+00> : vector<256xf32>
    %32 = vector.multi_reduction <add>, %31, %cst_24 [1] : vector<256x128xf32> to vector<256xf32>
    %33 = vector.shape_cast %32 : vector<256xf32> to vector<256x1xf32>
    %34 = math.log %33 : vector<256x1xf32>
    %35 = vector.broadcast %34 : vector<256x1xf32> to vector<256x128xf32>
    %36 = arith.subf %30, %35 : vector<256x128xf32>
    %c0_25 = arith.constant 0 : index
    %c0_26 = arith.constant 0 : index
    %37 = vector.load %arg10[%c0_25, %c0_26] : memref<256x128xf32, #tpu.memory_space<vmem>>, vector<256x128xf32>
    tpu.vector_store %arg10[%c0_25, %c0_26], %36 {strides = array<i32>} : memref<256x128xf32, #tpu.memory_space<vmem>>, vector<256x128xf32>,
    return
  }
  func.func @transform_0(%arg0: i32) -> (i32, i32) {
    %c0_i32 = arith.constant 0 : i32
    %c0_i32_0 = arith.constant 0 : i32
    return %arg0, %c0_i32 : i32, i32
  }
  func.func @transform_1(%arg0: i32) -> (i32, i32) {
    %c0_i32 = arith.constant 0 : i32
    %c0_i32_0 = arith.constant 0 : i32
    %c0_i32_1 = arith.constant 0 : i32
    return %c0_i32, %c0_i32_0 : i32, i32
  }
  func.func @transform_2(%arg0: i32) -> (i32, i32) {
    %c0_i32 = arith.constant 0 : i32
    %c0_i32_0 = arith.constant 0 : i32
    %c0_i32_1 = arith.constant 0 : i32
    return %c0_i32, %c0_i32_0 : i32, i32
  }
  func.func @transform_3(%arg0: i32) -> (i32, i32) {
    %c0_i32 = arith.constant 0 : i32
    %c0_i32_0 = arith.constant 0 : i32
    %c0_i32_1 = arith.constant 0 : i32
    return %c0_i32, %c0_i32_0 : i32, i32
  }
  func.func @transform_4(%arg0: i32) -> (i32, i32) {
    %c0_i32 = arith.constant 0 : i32
    %c0_i32_0 = arith.constant 0 : i32
    %c0_i32_1 = arith.constant 0 : i32
    return %c0_i32, %c0_i32_0 : i32, i32
  }
  func.func @transform_5(%arg0: i32) -> (i32, i32) {
    %c0_i32 = arith.constant 0 : i32
    %c0_i32_0 = arith.constant 0 : i32
    %c0_i32_1 = arith.constant 0 : i32
    return %c0_i32, %c0_i32_0 : i32, i32
  }
  func.func @transform_6(%arg0: i32) -> (i32, i32) {
    %c0_i32 = arith.constant 0 : i32
    %c0_i32_0 = arith.constant 0 : i32
    %c0_i32_1 = arith.constant 0 : i32
    return %c0_i32, %c0_i32_0 : i32, i32
  }
  func.func @transform_7(%arg0: i32) -> (i32, i32) {
    %c0_i32 = arith.constant 0 : i32
    %c0_i32_0 = arith.constant 0 : i32
    %c0_i32_1 = arith.constant 0 : i32
    return %c0_i32, %c0_i32_0 : i32, i32
  }
  func.func @transform_8(%arg0: i32) -> (i32, i32) {
    %c0_i32 = arith.constant 0 : i32
    %c0_i32_0 = arith.constant 0 : i32
    %c0_i32_1 = arith.constant 0 : i32
    return %c0_i32, %c0_i32_0 : i32, i32
  }
  func.func @transform_9(%arg0: i32) -> (i32, i32) {
    %c0_i32 = arith.constant 0 : i32
    %c0_i32_0 = arith.constant 0 : i32
    return %arg0, %c0_i32 : i32, i32
  }
}

</mosaic_0001>

<llo_original>
// kernel: feed_forward_network.1
$region0: #{feed_forward_network.1}
  #allocation0 [shape = 'u32[]', space=smem, size = 0x4, offset = 0x4, fixed_abs, tag = 'smem constant byte address 0x4 - core index']
  #allocation1 [shape = 'u32[144,128]{1,0:T(1,128)}', space=vmem, size = 0x12000, scoped, tag = 'internal scratch']
  %s0 = inlined_call_operand.vmem [shape: f32[512,896], index: 0, kind: input, shape index: {}]
  %s1 = inlined_call_operand.vmem [shape: f32[896,64], index: 1, kind: input, shape index: {}]
  %s2 = inlined_call_operand.vmem [shape: f32[1,64], index: 2, kind: input, shape index: {}]
  %s3 = inlined_call_operand.vmem [shape: f32[64,64], index: 3, kind: input, shape index: {}]
  %s4 = inlined_call_operand.vmem [shape: f32[1,64], index: 4, kind: input, shape index: {}]
  %s5 = inlined_call_operand.vmem [shape: f32[64,64], index: 5, kind: input, shape index: {}]
  %s6 = inlined_call_operand.vmem [shape: f32[1,64], index: 6, kind: input, shape index: {}]
  %s7 = inlined_call_operand.vmem [shape: f32[64,128], index: 7, kind: input, shape index: {}]
  %s8 = inlined_call_operand.vmem [shape: f32[1,128], index: 8, kind: input, shape index: {}]
  %s9 = inlined_call_operand.vmem [shape: f32[512,128], index: 9, kind: output, shape index: {}]
  %s10 = sld [smem:[#allocation0]]
  $region69: #{feed_forward_network.1} parent=0
    _
  %s12 = ssub.s32 1, %s10
  %s13 = scalar_select 0, %s12, %s10
  loop: start=0, step=1, limit=4
  $region2: #{feed_forward_network.1} parent=0 // loop_pre_header
    _
  $region3: #{feed_forward_network.1} parent=0 // loop_header
    %s15 = sphi 0, %s19
    %p16 = scmp.ge.s32.totalorder %s15, 4
    %s25 = sphi 0, %s27
    %s28 = sphi 0, %s25
    %s29 = sphi 0, %s28
    %s45 = sphi 0, %s29
    %s49 = sphi 0, %s49
    %s51 = sphi 0, %s49
    %s52 = sphi 0, %s51
    %s66 = sphi 0, %s52
    %s70 = sphi 0, %s70
    %s72 = sphi 0, %s70
    %s73 = sphi 0, %s72
    %s87 = sphi 0, %s73
    %s91 = sphi 0, %s91
    %s93 = sphi 0, %s91
    %s94 = sphi 0, %s93
    %s108 = sphi 0, %s94
    %s112 = sphi 0, %s112
    %s114 = sphi 0, %s112
    %s115 = sphi 0, %s114
    %s129 = sphi 0, %s115
    %s133 = sphi 0, %s133
    %s135 = sphi 0, %s133
    %s136 = sphi 0, %s135
    %s150 = sphi 0, %s136
    %s154 = sphi 0, %s154
    %s156 = sphi 0, %s154
    %s157 = sphi 0, %s156
    %s171 = sphi 0, %s157
    %s175 = sphi 0, %s175
    %s177 = sphi 0, %s175
    %s178 = sphi 0, %s177
    %s192 = sphi 0, %s178
    %s196 = sphi 0, %s196
    %s198 = sphi 0, %s196
    %s199 = sphi 0, %s198
    %s213 = sphi 0, %s199
    %s219 = sphi 0, %s221
    %s222 = sphi 0, %s219
    %s223 = sphi 0, %s222
    %s239 = sphi 0, %s223
  $region4: #{feed_forward_network.1} parent=0 // loop_header_branch
    %18 = sbr.rel (%p16) target = $region8
  $region5: #{feed_forward_network.1} parent=0 // loop_body
    %s20 = ssub.s32 %s15, 1
    %s21 = ssub.s32 %s15, 2
    %s22 = sadd.s32 %s15, 1
    %s23 = ssub.s32 %s15, %s22
    %p24 = scmp.eq.s32.totalorder %s23, 0
    %s26 = sadd.s32 %s25, 1
    %s27 = scalar_select %p24, %s25, %s26
    %p30 = pneg %p24
    %p31 = scmp.eq.s32.totalorder %s15, 1
    %p32 = por %p30, %p31
    %p33 = scmp.ne.s32.totalorder %s25, %s28
    %p34 = scmp.eq.s32.totalorder %s15, 0
    %p35 = por %p33, %p34
    %p36 = scmp.ne.s32.totalorder %s25, %s28
    %p37 = scmp.eq.s32.totalorder %s20, 1
    %p38 = por %p36, %p37
    %p39 = scmp.ne.s32.totalorder %s28, %s29
    %p40 = scmp.eq.s32.totalorder %s20, 0
    %p41 = por %p39, %p40
    %p42 = scmp.ne.s32.totalorder %s28, %s29
    %p43 = scmp.eq.s32.totalorder %s21, 1
    %p44 = por %p42, %p43
    %p46 = scmp.ne.s32.totalorder %s29, %s45
    %p47 = scmp.eq.s32.totalorder %s21, 0
    %p48 = por %p46, %p47
    %s50 = sadd.s32 %s49, 1
    %p53 = scmp.eq.s32.totalorder %s15, 1
    %p54 = scmp.ne.s32.totalorder %s49, %s51
    %p55 = scmp.eq.s32.totalorder %s15, 0
    %p56 = por %p54, %p55
    %p57 = scmp.ne.s32.totalorder %s49, %s51
    %p58 = scmp.eq.s32.totalorder %s20, 1
    %p59 = por %p57, %p58
    %p60 = scmp.ne.s32.totalorder %s51, %s52
    %p61 = scmp.eq.s32.totalorder %s20, 0
    %p62 = por %p60, %p61
    %p63 = scmp.ne.s32.totalorder %s51, %s52
    %p64 = scmp.eq.s32.totalorder %s21, 1
    %p65 = por %p63, %p64
    %p67 = scmp.ne.s32.totalorder %s52, %s66
    %p68 = scmp.eq.s32.totalorder %s21, 0
    %p69 = por %p67, %p68
    %s71 = sadd.s32 %s70, 1
    %p74 = scmp.eq.s32.totalorder %s15, 1
    %p75 = scmp.ne.s32.totalorder %s70, %s72
    %p76 = scmp.eq.s32.totalorder %s15, 0
    %p77 = por %p75, %p76
    %p78 = scmp.ne.s32.totalorder %s70, %s72
    %p79 = scmp.eq.s32.totalorder %s20, 1
    %p80 = por %p78, %p79
    %p81 = scmp.ne.s32.totalorder %s72, %s73
    %p82 = scmp.eq.s32.totalorder %s20, 0
    %p83 = por %p81, %p82
    %p84 = scmp.ne.s32.totalorder %s72, %s73
    %p85 = scmp.eq.s32.totalorder %s21, 1
    %p86 = por %p84, %p85
    %p88 = scmp.ne.s32.totalorder %s73, %s87
    %p89 = scmp.eq.s32.totalorder %s21, 0
    %p90 = por %p88, %p89
    %s92 = sadd.s32 %s91, 1
    %p95 = scmp.eq.s32.totalorder %s15, 1
    %p96 = scmp.ne.s32.totalorder %s91, %s93
    %p97 = scmp.eq.s32.totalorder %s15, 0
    %p98 = por %p96, %p97
    %p99 = scmp.ne.s32.totalorder %s91, %s93
    %p100 = scmp.eq.s32.totalorder %s20, 1
    %p101 = por %p99, %p100
    %p102 = scmp.ne.s32.totalorder %s93, %s94
    %p103 = scmp.eq.s32.totalorder %s20, 0
    %p104 = por %p102, %p103
    %p105 = scmp.ne.s32.totalorder %s93, %s94
    %p106 = scmp.eq.s32.totalorder %s21, 1
    %p107 = por %p105, %p106
    %p109 = scmp.ne.s32.totalorder %s94, %s108
    %p110 = scmp.eq.s32.totalorder %s21, 0
    %p111 = por %p109, %p110
    %s113 = sadd.s32 %s112, 1
    %p116 = scmp.eq.s32.totalorder %s15, 1
    %p117 = scmp.ne.s32.totalorder %s112, %s114
    %p118 = scmp.eq.s32.totalorder %s15, 0
    %p119 = por %p117, %p118
    %p120 = scmp.ne.s32.totalorder %s112, %s114
    %p121 = scmp.eq.s32.totalorder %s20, 1
    %p122 = por %p120, %p121
    %p123 = scmp.ne.s32.totalorder %s114, %s115
    %p124 = scmp.eq.s32.totalorder %s20, 0
    %p125 = por %p123, %p124
    %p126 = scmp.ne.s32.totalorder %s114, %s115
    %p127 = scmp.eq.s32.totalorder %s21, 1
    %p128 = por %p126, %p127
    %p130 = scmp.ne.s32.totalorder %s115, %s129
    %p131 = scmp.eq.s32.totalorder %s21, 0
    %p132 = por %p130, %p131
    %s134 = sadd.s32 %s133, 1
    %p137 = scmp.eq.s32.totalorder %s15, 1
    %p138 = scmp.ne.s32.totalorder %s133, %s135
    %p139 = scmp.eq.s32.totalorder %s15, 0
    %p140 = por %p138, %p139
    %p141 = scmp.ne.s32.totalorder %s133, %s135
    %p142 = scmp.eq.s32.totalorder %s20, 1
    %p143 = por %p141, %p142
    %p144 = scmp.ne.s32.totalorder %s135, %s136
    %p145 = scmp.eq.s32.totalorder %s20, 0
    %p146 = por %p144, %p145
    %p147 = scmp.ne.s32.totalorder %s135, %s136
    %p148 = scmp.eq.s32.totalorder %s21, 1
    %p149 = por %p147, %p148
    %p151 = scmp.ne.s32.totalorder %s136, %s150
    %p152 = scmp.eq.s32.totalorder %s21, 0
    %p153 = por %p151, %p152
    %s155 = sadd.s32 %s154, 1
    %p158 = scmp.eq.s32.totalorder %s15, 1
    %p159 = scmp.ne.s32.totalorder %s154, %s156
    %p160 = scmp.eq.s32.totalorder %s15, 0
    %p161 = por %p159, %p160
    %p162 = scmp.ne.s32.totalorder %s154, %s156
    %p163 = scmp.eq.s32.totalorder %s20, 1
    %p164 = por %p162, %p163
    %p165 = scmp.ne.s32.totalorder %s156, %s157
    %p166 = scmp.eq.s32.totalorder %s20, 0
    %p167 = por %p165, %p166
    %p168 = scmp.ne.s32.totalorder %s156, %s157
    %p169 = scmp.eq.s32.totalorder %s21, 1
    %p170 = por %p168, %p169
    %p172 = scmp.ne.s32.totalorder %s157, %s171
    %p173 = scmp.eq.s32.totalorder %s21, 0
    %p174 = por %p172, %p173
    %s176 = sadd.s32 %s175, 1
    %p179 = scmp.eq.s32.totalorder %s15, 1
    %p180 = scmp.ne.s32.totalorder %s175, %s177
    %p181 = scmp.eq.s32.totalorder %s15, 0
    %p182 = por %p180, %p181
    %p183 = scmp.ne.s32.totalorder %s175, %s177
    %p184 = scmp.eq.s32.totalorder %s20, 1
    %p185 = por %p183, %p184
    %p186 = scmp.ne.s32.totalorder %s177, %s178
    %p187 = scmp.eq.s32.totalorder %s20, 0
    %p188 = por %p186, %p187
    %p189 = scmp.ne.s32.totalorder %s177, %s178
    %p190 = scmp.eq.s32.totalorder %s21, 1
    %p191 = por %p189, %p190
    %p193 = scmp.ne.s32.totalorder %s178, %s192
    %p194 = scmp.eq.s32.totalorder %s21, 0
    %p195 = por %p193, %p194
    %s197 = sadd.s32 %s196, 1
    %p200 = scmp.eq.s32.totalorder %s15, 1
    %p201 = scmp.ne.s32.totalorder %s196, %s198
    %p202 = scmp.eq.s32.totalorder %s15, 0
    %p203 = por %p201, %p202
    %p204 = scmp.ne.s32.totalorder %s196, %s198
    %p205 = scmp.eq.s32.totalorder %s20, 1
    %p206 = por %p204, %p205
    %p207 = scmp.ne.s32.totalorder %s198, %s199
    %p208 = scmp.eq.s32.totalorder %s20, 0
    %p209 = por %p207, %p208
    %p210 = scmp.ne.s32.totalorder %s198, %s199
    %p211 = scmp.eq.s32.totalorder %s21, 1
    %p212 = por %p210, %p211
    %p214 = scmp.ne.s32.totalorder %s199, %s213
    %p215 = scmp.eq.s32.totalorder %s21, 0
    %p216 = por %p214, %p215
    %s217 = ssub.s32 %s15, %s22
    %p218 = scmp.eq.s32.totalorder %s217, 0
    %s220 = sadd.s32 %s219, 1
    %s221 = scalar_select %p218, %s219, %s220
    %p224 = pneg %p218
    %p225 = scmp.eq.s32.totalorder %s15, 1
    %p226 = por %p224, %p225
    %p227 = scmp.ne.s32.totalorder %s219, %s222
    %p228 = scmp.eq.s32.totalorder %s15, 0
    %p229 = por %p227, %p228
    %p230 = scmp.ne.s32.totalorder %s219, %s222
    %p231 = scmp.eq.s32.totalorder %s20, 1
    %p232 = por %p230, %p231
    %p233 = scmp.ne.s32.totalorder %s222, %s223
    %p234 = scmp.eq.s32.totalorder %s20, 0
    %p235 = por %p233, %p234
    %p236 = scmp.ne.s32.totalorder %s222, %s223
    %p237 = scmp.eq.s32.totalorder %s21, 1
    %p238 = por %p236, %p237
    %p240 = scmp.ne.s32.totalorder %s223, %s239
    %p241 = scmp.eq.s32.totalorder %s21, 0
    %p242 = por %p240, %p241
    %p243 = scmp.le.s32.totalorder 1, %s15
    %p244 = scmp.lt.s32.totalorder %s15, 3
    %p245 = pnand %p243, %p244
    %p246 = pneg %p245
    // Predicated region
    $region9: #{feed_forward_network.1} parent=5 // pred_check
      _
    $region10: #{feed_forward_network.1} parent=5 // pred_check_branch
      %248 = sbr.rel (%p245) target = $region12
    $region11: #{feed_forward_network.1} parent=5 // pred_region
      %s249 = ssub.s32 %s15, 1
      // Predicated region
      $region13: #{feed_forward_network.1} parent=11 // pred_check
        %p250 = pneg %p62
      $region14: #{feed_forward_network.1} parent=11 // pred_check_branch
        %252 = sbr.rel (%p250) target = $region16
      $region15: #{feed_forward_network.1} parent=11 // pred_region
        _
      $region16: #{feed_forward_network.1} parent=11 // pred_fallthru
        _
      // Predicated region
      $region17: #{feed_forward_network.1} parent=11 // pred_check
        %p253 = pneg %p83
      $region18: #{feed_forward_network.1} parent=11 // pred_check_branch
        %255 = sbr.rel (%p253) target = $region20
      $region19: #{feed_forward_network.1} parent=11 // pred_region
        _
      $region20: #{feed_forward_network.1} parent=11 // pred_fallthru
        _
      // Predicated region
      $region21: #{feed_forward_network.1} parent=11 // pred_check
        %p256 = pneg %p104
      $region22: #{feed_forward_network.1} parent=11 // pred_check_branch
        %258 = sbr.rel (%p256) target = $region24
      $region23: #{feed_forward_network.1} parent=11 // pred_region
        _
      $region24: #{feed_forward_network.1} parent=11 // pred_fallthru
        _
      // Predicated region
      $region25: #{feed_forward_network.1} parent=11 // pred_check
        %p259 = pneg %p125
      $region26: #{feed_forward_network.1} parent=11 // pred_check_branch
        %261 = sbr.rel (%p259) target = $region28
      $region27: #{feed_forward_network.1} parent=11 // pred_region
        _
      $region28: #{feed_forward_network.1} parent=11 // pred_fallthru
        _
      // Predicated region
      $region29: #{feed_forward_network.1} parent=11 // pred_check
        %p262 = pneg %p146
      $region30: #{feed_forward_network.1} parent=11 // pred_check_branch
        %264 = sbr.rel (%p262) target = $region32
      $region31: #{feed_forward_network.1} parent=11 // pred_region
        _
      $region32: #{feed_forward_network.1} parent=11 // pred_fallthru
        _
      // Predicated region
      $region33: #{feed_forward_network.1} parent=11 // pred_check
        %p265 = pneg %p167
      $region34: #{feed_forward_network.1} parent=11 // pred_check_branch
        %267 = sbr.rel (%p265) target = $region36
      $region35: #{feed_forward_network.1} parent=11 // pred_region
        _
      $region36: #{feed_forward_network.1} parent=11 // pred_fallthru
        _
      // Predicated region
      $region37: #{feed_forward_network.1} parent=11 // pred_check
        %p268 = pneg %p188
      $region38: #{feed_forward_network.1} parent=11 // pred_check_branch
        %270 = sbr.rel (%p268) target = $region40
      $region39: #{feed_forward_network.1} parent=11 // pred_region
        _
      $region40: #{feed_forward_network.1} parent=11 // pred_fallthru
        _
      // Predicated region
      $region41: #{feed_forward_network.1} parent=11 // pred_check
        %p271 = pneg %p209
      $region42: #{feed_forward_network.1} parent=11 // pred_check_branch
        %273 = sbr.rel (%p271) target = $region44
      $region43: #{feed_forward_network.1} parent=11 // pred_region
        _
      $region44: #{feed_forward_network.1} parent=11 // pred_fallthru
        _
    $region12: #{feed_forward_network.1} parent=5 // pred_fallthru
      _
    %p274 = scmp.lt.s32.totalorder %s15, 2
    // Predicated region
    $region45: #{feed_forward_network.1} parent=5 // pred_check
      %p275 = pneg %p274
    $region46: #{feed_forward_network.1} parent=5 // pred_check_branch
      %277 = sbr.rel (%p275) target = $region48
    $region47: #{feed_forward_network.1} parent=5 // pred_region
      // Predicated region
      $region49: #{feed_forward_network.1} parent=47 // pred_check
        %p278 = pneg %p35
      $region50: #{feed_forward_network.1} parent=47 // pred_check_branch
        %280 = sbr.rel (%p278) target = $region52
      $region51: #{feed_forward_network.1} parent=47 // pred_region
        %s281 = smul.u32 32, %s15
        %p282 = scmp.lt.s32.totalorder %s281, 63
        %s283 = scalar_select %p282, %s281, 63
        %s284 = smul.addr %s283, 7
        %s285 = smul.addr %s284, 8
        %s286 = scalar_lea.vmem %s0, %s285
        %s287 = smul.u32 32, %s15
      $region52: #{feed_forward_network.1} parent=47 // pred_fallthru
        _
    $region48: #{feed_forward_network.1} parent=5 // pred_fallthru
      _
    %p288 = scmp.le.s32.totalorder 1, %s15
    %p289 = scmp.lt.s32.totalorder %s15, 3
    %p290 = pnand %p288, %p289
    %p291 = pneg %p290
    // Predicated region
    $region53: #{feed_forward_network.1} parent=5 // pred_check
      _
    $region54: #{feed_forward_network.1} parent=5 // pred_check_branch
      %293 = sbr.rel (%p290) target = $region56
    $region55: #{feed_forward_network.1} parent=5 // pred_region
      %s294 = ssub.s32 %s15, 1
      %s295 = smul.u32 32, %s20
      %p296 = scmp.lt.s32.totalorder %s295, 63
      %s297 = scalar_select %p296, %s295, 63
      %s298 = smul.addr %s297, 7
      %s299 = smul.addr %s298, 8
      %s300 = scalar_lea.vmem %s0, %s299
      %p301 = pneg %p41
      %p302 = pneg %p38
      %p303 = pneg %p62
      %p304 = pneg %p59
      %p305 = pneg %p83
      %p306 = pneg %p80
      %p307 = pneg %p104
      %p308 = pneg %p101
      %p309 = pneg %p125
      %p310 = pneg %p122
      %p311 = pneg %p146
      %p312 = pneg %p143
      %p313 = pneg %p167
      %p314 = pneg %p164
      %p315 = pneg %p188
      %p316 = pneg %p185
      %p317 = pneg %p209
      %p318 = pneg %p206
      %p319 = pneg %p235
      %p320 = pneg %p232
      %s321 = smul.u32 32, %s20
      %p322 = scmp.lt.s32.totalorder %s321, 63
      %s323 = scalar_select %p322, %s321, 63
      %s324 = smul.addr %s323, 8
      %s325 = scalar_lea.vmem %s9, %s324
      %s326 = smul.u32 32, %s20
      %p327 = scmp.lt.s32.totalorder %s326, 63
      %s328 = scalar_select %p327, %s326, 63
      %s329 = smul.addr %s328, 7
      %s330 = smul.addr %s329, 8
      %s331 = scalar_lea.vmem %s0, %s330
      %s332 = smul.u32 32, %s20
      %s333 = smul.u32 32, %s20
      %p334 = scmp.lt.s32.totalorder %s333, 63
      %s335 = scalar_select %p334, %s333, 63
      %s336 = smul.addr %s335, 8
      %s337 = scalar_lea.vmem %s9, %s336
      %s338 = smul.u32 32, %s20
      %v339 = vld [vmem:[%s331] sm:$0xff]
      %v340 = vld [vmem:[%s331 + $0x8] sm:$0xff]
      %v341 = vld [vmem:[%s331 + $0x10] sm:$0xff]
      %v342 = vld [vmem:[%s331 + $0x18] sm:$0xff]
      %v343 = vld [vmem:[%s331 + $0x20] sm:$0xff]
      %v344 = vld [vmem:[%s331 + $0x28] sm:$0xff]
      %v345 = vld [vmem:[%s331 + $0x30] sm:$0xff]
      %v346 = vld [vmem:[%s331 + $0x38] sm:$0xff]
      %v347 = vld [vmem:[%s331 + $0x40] sm:$0xff]
      %v348 = vld [vmem:[%s331 + $0x48] sm:$0xff]
      %v349 = vld [vmem:[%s331 + $0x50] sm:$0xff]
      %v350 = vld [vmem:[%s331 + $0x58] sm:$0xff]
      %v351 = vld [vmem:[%s331 + $0x60] sm:$0xff]
      %v352 = vld [vmem:[%s331 + $0x68] sm:$0xff]
      %v353 = vld [vmem:[%s331 + $0x70] sm:$0xff]
      %v354 = vld [vmem:[%s331 + $0x78] sm:$0xff]
      %v355 = vld [vmem:[%s331 + $0x80] sm:$0xff]
      %v356 = vld [vmem:[%s331 + $0x88] sm:$0xff]
      %v357 = vld [vmem:[%s331 + $0x90] sm:$0xff]
      %v358 = vld [vmem:[%s331 + $0x98] sm:$0xff]
      %v359 = vld [vmem:[%s331 + $0xa0] sm:$0xff]
      %v360 = vld [vmem:[%s331 + $0xa8] sm:$0xff]
      %v361 = vld [vmem:[%s331 + $0xb0] sm:$0xff]
      %v362 = vld [vmem:[%s331 + $0xb8] sm:$0xff]
      %v363 = vld [vmem:[%s331 + $0xc0] sm:$0xff]
      %v364 = vld [vmem:[%s331 + $0xc8] sm:$0xff]
      %v365 = vld [vmem:[%s331 + $0xd0] sm:$0xff]
      %v366 = vld [vmem:[%s331 + $0xd8] sm:$0xff]
      %v367 = vld [vmem:[%s331 + $0xe0] sm:$0xff]
      %v368 = vld [vmem:[%s331 + $0xe8] sm:$0xff]
      %v369 = vld [vmem:[%s331 + $0xf0] sm:$0xff]
      %v370 = vld [vmem:[%s331 + $0xf8] sm:$0xff]
      %v371 = vld [vmem:[%s331 + $0x100] sm:$0xff]
      %v372 = vld [vmem:[%s331 + $0x108] sm:$0xff]
      %v373 = vld [vmem:[%s331 + $0x110] sm:$0xff]
      %v374 = vld [vmem:[%s331 + $0x118] sm:$0xff]
      %v375 = vld [vmem:[%s331 + $0x120] sm:$0xff]
      %v376 = vld [vmem:[%s331 + $0x128] sm:$0xff]
      %v377 = vld [vmem:[%s331 + $0x130] sm:$0xff]
      %v378 = vld [vmem:[%s331 + $0x138] sm:$0xff]
      %v379 = vld [vmem:[%s331 + $0x140] sm:$0xff]
      %v380 = vld [vmem:[%s331 + $0x148] sm:$0xff]
      %v381 = vld [vmem:[%s331 + $0x150] sm:$0xff]
      %v382 = vld [vmem:[%s331 + $0x158] sm:$0xff]
      %v383 = vld [vmem:[%s331 + $0x160] sm:$0xff]
      %v384 = vld [vmem:[%s331 + $0x168] sm:$0xff]
      %v385 = vld [vmem:[%s331 + $0x170] sm:$0xff]
      %v386 = vld [vmem:[%s331 + $0x178] sm:$0xff]
      %v387 = vld [vmem:[%s331 + $0x180] sm:$0xff]
      %v388 = vld [vmem:[%s331 + $0x188] sm:$0xff]
      %v389 = vld [vmem:[%s331 + $0x190] sm:$0xff]
      %v390 = vld [vmem:[%s331 + $0x198] sm:$0xff]
      %v391 = vld [vmem:[%s331 + $0x1a0] sm:$0xff]
      %v392 = vld [vmem:[%s331 + $0x1a8] sm:$0xff]
      %v393 = vld [vmem:[%s331 + $0x1b0] sm:$0xff]
      %v394 = vld [vmem:[%s331 + $0x1b8] sm:$0xff]
      %v395 = vld [vmem:[%s331 + $0x1c0] sm:$0xff]
      %v396 = vld [vmem:[%s331 + $0x1c8] sm:$0xff]
      %v397 = vld [vmem:[%s331 + $0x1d0] sm:$0xff]
      %v398 = vld [vmem:[%s331 + $0x1d8] sm:$0xff]
      %v399 = vld [vmem:[%s331 + $0x1e0] sm:$0xff]
      %v400 = vld [vmem:[%s331 + $0x1e8] sm:$0xff]
      %v401 = vld [vmem:[%s331 + $0x1f0] sm:$0xff]
      %v402 = vld [vmem:[%s331 + $0x1f8] sm:$0xff]
      %v403 = vld [vmem:[%s331 + $0x200] sm:$0xff]
      %v404 = vld [vmem:[%s331 + $0x208] sm:$0xff]
      %v405 = vld [vmem:[%s331 + $0x210] sm:$0xff]
      %v406 = vld [vmem:[%s331 + $0x218] sm:$0xff]
      %v407 = vld [vmem:[%s331 + $0x220] sm:$0xff]
      %v408 = vld [vmem:[%s331 + $0x228] sm:$0xff]
      %v409 = vld [vmem:[%s331 + $0x230] sm:$0xff]
      %v410 = vld [vmem:[%s331 + $0x238] sm:$0xff]
      %v411 = vld [vmem:[%s331 + $0x240] sm:$0xff]
      %v412 = vld [vmem:[%s331 + $0x248] sm:$0xff]
      %v413 = vld [vmem:[%s331 + $0x250] sm:$0xff]
      %v414 = vld [vmem:[%s331 + $0x258] sm:$0xff]
      %v415 = vld [vmem:[%s331 + $0x260] sm:$0xff]
      %v416 = vld [vmem:[%s331 + $0x268] sm:$0xff]
      %v417 = vld [vmem:[%s331 + $0x270] sm:$0xff]
      %v418 = vld [vmem:[%s331 + $0x278] sm:$0xff]
      %v419 = vld [vmem:[%s331 + $0x280] sm:$0xff]
      %v420 = vld [vmem:[%s331 + $0x288] sm:$0xff]
      %v421 = vld [vmem:[%s331 + $0x290] sm:$0xff]
      %v422 = vld [vmem:[%s331 + $0x298] sm:$0xff]
      %v423 = vld [vmem:[%s331 + $0x2a0] sm:$0xff]
      %v424 = vld [vmem:[%s331 + $0x2a8] sm:$0xff]
      %v425 = vld [vmem:[%s331 + $0x2b0] sm:$0xff]
      %v426 = vld [vmem:[%s331 + $0x2b8] sm:$0xff]
      %v427 = vld [vmem:[%s331 + $0x2c0] sm:$0xff]
      %v428 = vld [vmem:[%s331 + $0x2c8] sm:$0xff]
      %v429 = vld [vmem:[%s331 + $0x2d0] sm:$0xff]
      %v430 = vld [vmem:[%s331 + $0x2d8] sm:$0xff]
      %v431 = vld [vmem:[%s331 + $0x2e0] sm:$0xff]
      %v432 = vld [vmem:[%s331 + $0x2e8] sm:$0xff]
      %v433 = vld [vmem:[%s331 + $0x2f0] sm:$0xff]
      %v434 = vld [vmem:[%s331 + $0x2f8] sm:$0xff]
      %v435 = vld [vmem:[%s331 + $0x300] sm:$0xff]
      %v436 = vld [vmem:[%s331 + $0x308] sm:$0xff]
      %v437 = vld [vmem:[%s331 + $0x310] sm:$0xff]
      %v438 = vld [vmem:[%s331 + $0x318] sm:$0xff]
      %v439 = vld [vmem:[%s331 + $0x320] sm:$0xff]
      %v440 = vld [vmem:[%s331 + $0x328] sm:$0xff]
      %v441 = vld [vmem:[%s331 + $0x330] sm:$0xff]
      %v442 = vld [vmem:[%s331 + $0x338] sm:$0xff]
      %v443 = vld [vmem:[%s331 + $0x340] sm:$0xff]
      %v444 = vld [vmem:[%s331 + $0x348] sm:$0xff]
      %v445 = vld [vmem:[%s331 + $0x350] sm:$0xff]
      %v446 = vld [vmem:[%s331 + $0x358] sm:$0xff]
      %v447 = vld [vmem:[%s331 + $0x360] sm:$0xff]
      %v448 = vld [vmem:[%s331 + $0x368] sm:$0xff]
      %v449 = vld [vmem:[%s331 + $0x370] sm:$0xff]
      %v450 = vld [vmem:[%s331 + $0x378] sm:$0xff]
      %v451 = vld [vmem:[%s331 + $0x380] sm:$0xff]
      %v452 = vld [vmem:[%s331 + $0x388] sm:$0xff]
      %v453 = vld [vmem:[%s331 + $0x390] sm:$0xff]
      %v454 = vld [vmem:[%s331 + $0x398] sm:$0xff]
      %v455 = vld [vmem:[%s331 + $0x3a0] sm:$0xff]
      %v456 = vld [vmem:[%s331 + $0x3a8] sm:$0xff]
      %v457 = vld [vmem:[%s331 + $0x3b0] sm:$0xff]
      %v458 = vld [vmem:[%s331 + $0x3b8] sm:$0xff]
      %v459 = vld [vmem:[%s331 + $0x3c0] sm:$0xff]
      %v460 = vld [vmem:[%s331 + $0x3c8] sm:$0xff]
      %v461 = vld [vmem:[%s331 + $0x3d0] sm:$0xff]
      %v462 = vld [vmem:[%s331 + $0x3d8] sm:$0xff]
      %v463 = vld [vmem:[%s331 + $0x3e0] sm:$0xff]
      %v464 = vld [vmem:[%s331 + $0x3e8] sm:$0xff]
      %v465 = vld [vmem:[%s331 + $0x3f0] sm:$0xff]
      %v466 = vld [vmem:[%s331 + $0x3f8] sm:$0xff]
      %v467 = vld [vmem:[%s331 + $0x400] sm:$0xff]
      %v468 = vld [vmem:[%s331 + $0x408] sm:$0xff]
      %v469 = vld [vmem:[%s331 + $0x410] sm:$0xff]
      %v470 = vld [vmem:[%s331 + $0x418] sm:$0xff]
      %v471 = vld [vmem:[%s331 + $0x420] sm:$0xff]
      %v472 = vld [vmem:[%s331 + $0x428] sm:$0xff]
      %v473 = vld [vmem:[%s331 + $0x430] sm:$0xff]
      %v474 = vld [vmem:[%s331 + $0x438] sm:$0xff]
      %v475 = vld [vmem:[%s331 + $0x440] sm:$0xff]
      %v476 = vld [vmem:[%s331 + $0x448] sm:$0xff]
      %v477 = vld [vmem:[%s331 + $0x450] sm:$0xff]
      %v478 = vld [vmem:[%s331 + $0x458] sm:$0xff]
      %v479 = vld [vmem:[%s331 + $0x460] sm:$0xff]
      %v480 = vld [vmem:[%s331 + $0x468] sm:$0xff]
      %v481 = vld [vmem:[%s331 + $0x470] sm:$0xff]
      %v482 = vld [vmem:[%s331 + $0x478] sm:$0xff]
      %v483 = vld [vmem:[%s331 + $0x480] sm:$0xff]
      %v484 = vld [vmem:[%s331 + $0x488] sm:$0xff]
      %v485 = vld [vmem:[%s331 + $0x490] sm:$0xff]
      %v486 = vld [vmem:[%s331 + $0x498] sm:$0xff]
      %v487 = vld [vmem:[%s331 + $0x4a0] sm:$0xff]
      %v488 = vld [vmem:[%s331 + $0x4a8] sm:$0xff]
      %v489 = vld [vmem:[%s331 + $0x4b0] sm:$0xff]
      %v490 = vld [vmem:[%s331 + $0x4b8] sm:$0xff]
      %v491 = vld [vmem:[%s331 + $0x4c0] sm:$0xff]
      %v492 = vld [vmem:[%s331 + $0x4c8] sm:$0xff]
      %v493 = vld [vmem:[%s331 + $0x4d0] sm:$0xff]
      %v494 = vld [vmem:[%s331 + $0x4d8] sm:$0xff]
      %v495 = vld [vmem:[%s331 + $0x4e0] sm:$0xff]
      %v496 = vld [vmem:[%s331 + $0x4e8] sm:$0xff]
      %v497 = vld [vmem:[%s331 + $0x4f0] sm:$0xff]
      %v498 = vld [vmem:[%s331 + $0x4f8] sm:$0xff]
      %v499 = vld [vmem:[%s331 + $0x500] sm:$0xff]
      %v500 = vld [vmem:[%s331 + $0x508] sm:$0xff]
      %v501 = vld [vmem:[%s331 + $0x510] sm:$0xff]
      %v502 = vld [vmem:[%s331 + $0x518] sm:$0xff]
      %v503 = vld [vmem:[%s331 + $0x520] sm:$0xff]
      %v504 = vld [vmem:[%s331 + $0x528] sm:$0xff]
      %v505 = vld [vmem:[%s331 + $0x530] sm:$0xff]
      %v506 = vld [vmem:[%s331 + $0x538] sm:$0xff]
      %v507 = vld [vmem:[%s331 + $0x540] sm:$0xff]
      %v508 = vld [vmem:[%s331 + $0x548] sm:$0xff]
      %v509 = vld [vmem:[%s331 + $0x550] sm:$0xff]
      %v510 = vld [vmem:[%s331 + $0x558] sm:$0xff]
      %v511 = vld [vmem:[%s331 + $0x560] sm:$0xff]
      %v512 = vld [vmem:[%s331 + $0x568] sm:$0xff]
      %v513 = vld [vmem:[%s331 + $0x570] sm:$0xff]
      %v514 = vld [vmem:[%s331 + $0x578] sm:$0xff]
      %v515 = vld [vmem:[%s331 + $0x580] sm:$0xff]
      %v516 = vld [vmem:[%s331 + $0x588] sm:$0xff]
      %v517 = vld [vmem:[%s331 + $0x590] sm:$0xff]
      %v518 = vld [vmem:[%s331 + $0x598] sm:$0xff]
      %v519 = vld [vmem:[%s331 + $0x5a0] sm:$0xff]
      %v520 = vld [vmem:[%s331 + $0x5a8] sm:$0xff]
      %v521 = vld [vmem:[%s331 + $0x5b0] sm:$0xff]
      %v522 = vld [vmem:[%s331 + $0x5b8] sm:$0xff]
      %v523 = vld [vmem:[%s331 + $0x5c0] sm:$0xff]
      %v524 = vld [vmem:[%s331 + $0x5c8] sm:$0xff]
      %v525 = vld [vmem:[%s331 + $0x5d0] sm:$0xff]
      %v526 = vld [vmem:[%s331 + $0x5d8] sm:$0xff]
      %v527 = vld [vmem:[%s331 + $0x5e0] sm:$0xff]
      %v528 = vld [vmem:[%s331 + $0x5e8] sm:$0xff]
      %v529 = vld [vmem:[%s331 + $0x5f0] sm:$0xff]
      %v530 = vld [vmem:[%s331 + $0x5f8] sm:$0xff]
      %v531 = vld [vmem:[%s331 + $0x600] sm:$0xff]
      %v532 = vld [vmem:[%s331 + $0x608] sm:$0xff]
      %v533 = vld [vmem:[%s331 + $0x610] sm:$0xff]
      %v534 = vld [vmem:[%s331 + $0x618] sm:$0xff]
      %v535 = vld [vmem:[%s331 + $0x620] sm:$0xff]
      %v536 = vld [vmem:[%s331 + $0x628] sm:$0xff]
      %v537 = vld [vmem:[%s331 + $0x630] sm:$0xff]
      %v538 = vld [vmem:[%s331 + $0x638] sm:$0xff]
      %v539 = vld [vmem:[%s331 + $0x640] sm:$0xff]
      %v540 = vld [vmem:[%s331 + $0x648] sm:$0xff]
      %v541 = vld [vmem:[%s331 + $0x650] sm:$0xff]
      %v542 = vld [vmem:[%s331 + $0x658] sm:$0xff]
      %v543 = vld [vmem:[%s331 + $0x660] sm:$0xff]
      %v544 = vld [vmem:[%s331 + $0x668] sm:$0xff]
      %v545 = vld [vmem:[%s331 + $0x670] sm:$0xff]
      %v546 = vld [vmem:[%s331 + $0x678] sm:$0xff]
      %v547 = vld [vmem:[%s331 + $0x680] sm:$0xff]
      %v548 = vld [vmem:[%s331 + $0x688] sm:$0xff]
      %v549 = vld [vmem:[%s331 + $0x690] sm:$0xff]
      %v550 = vld [vmem:[%s331 + $0x698] sm:$0xff]
      %v551 = vld [vmem:[%s331 + $0x6a0] sm:$0xff]
      %v552 = vld [vmem:[%s331 + $0x6a8] sm:$0xff]
      %v553 = vld [vmem:[%s331 + $0x6b0] sm:$0xff]
      %v554 = vld [vmem:[%s331 + $0x6b8] sm:$0xff]
      %v555 = vld [vmem:[%s331 + $0x6c0] sm:$0xff]
      %v556 = vld [vmem:[%s331 + $0x6c8] sm:$0xff]
      %v557 = vld [vmem:[%s331 + $0x6d0] sm:$0xff]
      %v558 = vld [vmem:[%s331 + $0x6d8] sm:$0xff]
      %v559 = vld [vmem:[%s331 + $0x6e0] sm:$0xff]
      %v560 = vld [vmem:[%s331 + $0x6e8] sm:$0xff]
      %v561 = vld [vmem:[%s331 + $0x6f0] sm:$0xff]
      %v562 = vld [vmem:[%s331 + $0x6f8] sm:$0xff]
      %v563 = vld [vmem:[%s1] sm:$0xff]
      %v564 = vld [vmem:[%s1 + $0x8] sm:$0xff]
      %v565 = vld [vmem:[%s1 + $0x10] sm:$0xff]
      %v566 = vld [vmem:[%s1 + $0x18] sm:$0xff]
      %v567 = vld [vmem:[%s1 + $0x20] sm:$0xff]
      %v568 = vld [vmem:[%s1 + $0x28] sm:$0xff]
      %v569 = vld [vmem:[%s1 + $0x30] sm:$0xff]
      %v570 = vld [vmem:[%s1 + $0x38] sm:$0xff]
      %v571 = vld [vmem:[%s1 + $0x40] sm:$0xff]
      %v572 = vld [vmem:[%s1 + $0x48] sm:$0xff]
      %v573 = vld [vmem:[%s1 + $0x50] sm:$0xff]
      %v574 = vld [vmem:[%s1 + $0x58] sm:$0xff]
      %v575 = vld [vmem:[%s1 + $0x60] sm:$0xff]
      %v576 = vld [vmem:[%s1 + $0x68] sm:$0xff]
      %v577 = vld [vmem:[%s1 + $0x70] sm:$0xff]
      %v578 = vld [vmem:[%s1 + $0x78] sm:$0xff]
      %v579 = vld [vmem:[%s1 + $0x80] sm:$0xff]
      %v580 = vld [vmem:[%s1 + $0x88] sm:$0xff]
      %v581 = vld [vmem:[%s1 + $0x90] sm:$0xff]
      %v582 = vld [vmem:[%s1 + $0x98] sm:$0xff]
      %v583 = vld [vmem:[%s1 + $0xa0] sm:$0xff]
      %v584 = vld [vmem:[%s1 + $0xa8] sm:$0xff]
      %v585 = vld [vmem:[%s1 + $0xb0] sm:$0xff]
      %v586 = vld [vmem:[%s1 + $0xb8] sm:$0xff]
      %v587 = vld [vmem:[%s1 + $0xc0] sm:$0xff]
      %v588 = vld [vmem:[%s1 + $0xc8] sm:$0xff]
      %v589 = vld [vmem:[%s1 + $0xd0] sm:$0xff]
      %v590 = vld [vmem:[%s1 + $0xd8] sm:$0xff]
      %v591 = vld [vmem:[%s1 + $0xe0] sm:$0xff]
      %v592 = vld [vmem:[%s1 + $0xe8] sm:$0xff]
      %v593 = vld [vmem:[%s1 + $0xf0] sm:$0xff]
      %v594 = vld [vmem:[%s1 + $0xf8] sm:$0xff]
      %v595 = vld [vmem:[%s1 + $0x100] sm:$0xff]
      %v596 = vld [vmem:[%s1 + $0x108] sm:$0xff]
      %v597 = vld [vmem:[%s1 + $0x110] sm:$0xff]
      %v598 = vld [vmem:[%s1 + $0x118] sm:$0xff]
      %v599 = vld [vmem:[%s1 + $0x120] sm:$0xff]
      %v600 = vld [vmem:[%s1 + $0x128] sm:$0xff]
      %v601 = vld [vmem:[%s1 + $0x130] sm:$0xff]
      %v602 = vld [vmem:[%s1 + $0x138] sm:$0xff]
      %v603 = vld [vmem:[%s1 + $0x140] sm:$0xff]
      %v604 = vld [vmem:[%s1 + $0x148] sm:$0xff]
      %v605 = vld [vmem:[%s1 + $0x150] sm:$0xff]
      %v606 = vld [vmem:[%s1 + $0x158] sm:$0xff]
      %v607 = vld [vmem:[%s1 + $0x160] sm:$0xff]
      %v608 = vld [vmem:[%s1 + $0x168] sm:$0xff]
      %v609 = vld [vmem:[%s1 + $0x170] sm:$0xff]
      %v610 = vld [vmem:[%s1 + $0x178] sm:$0xff]
      %v611 = vld [vmem:[%s1 + $0x180] sm:$0xff]
      %v612 = vld [vmem:[%s1 + $0x188] sm:$0xff]
      %v613 = vld [vmem:[%s1 + $0x190] sm:$0xff]
      %v614 = vld [vmem:[%s1 + $0x198] sm:$0xff]
      %v615 = vld [vmem:[%s1 + $0x1a0] sm:$0xff]
      %v616 = vld [vmem:[%s1 + $0x1a8] sm:$0xff]
      %v617 = vld [vmem:[%s1 + $0x1b0] sm:$0xff]
      %v618 = vld [vmem:[%s1 + $0x1b8] sm:$0xff]
      %v619 = vld [vmem:[%s1 + $0x1c0] sm:$0xff]
      %v620 = vld [vmem:[%s1 + $0x1c8] sm:$0xff]
      %v621 = vld [vmem:[%s1 + $0x1d0] sm:$0xff]
      %v622 = vld [vmem:[%s1 + $0x1d8] sm:$0xff]
      %v623 = vld [vmem:[%s1 + $0x1e0] sm:$0xff]
      %v624 = vld [vmem:[%s1 + $0x1e8] sm:$0xff]
      %v625 = vld [vmem:[%s1 + $0x1f0] sm:$0xff]
      %v626 = vld [vmem:[%s1 + $0x1f8] sm:$0xff]
      %v627 = vld [vmem:[%s1 + $0x200] sm:$0xff]
      %v628 = vld [vmem:[%s1 + $0x208] sm:$0xff]
      %v629 = vld [vmem:[%s1 + $0x210] sm:$0xff]
      %v630 = vld [vmem:[%s1 + $0x218] sm:$0xff]
      %v631 = vld [vmem:[%s1 + $0x220] sm:$0xff]
      %v632 = vld [vmem:[%s1 + $0x228] sm:$0xff]
      %v633 = vld [vmem:[%s1 + $0x230] sm:$0xff]
      %v634 = vld [vmem:[%s1 + $0x238] sm:$0xff]
      %v635 = vld [vmem:[%s1 + $0x240] sm:$0xff]
      %v636 = vld [vmem:[%s1 + $0x248] sm:$0xff]
      %v637 = vld [vmem:[%s1 + $0x250] sm:$0xff]
      %v638 = vld [vmem:[%s1 + $0x258] sm:$0xff]
      %v639 = vld [vmem:[%s1 + $0x260] sm:$0xff]
      %v640 = vld [vmem:[%s1 + $0x268] sm:$0xff]
      %v641 = vld [vmem:[%s1 + $0x270] sm:$0xff]
      %v642 = vld [vmem:[%s1 + $0x278] sm:$0xff]
      %v643 = vld [vmem:[%s1 + $0x280] sm:$0xff]
      %v644 = vld [vmem:[%s1 + $0x288] sm:$0xff]
      %v645 = vld [vmem:[%s1 + $0x290] sm:$0xff]
      %v646 = vld [vmem:[%s1 + $0x298] sm:$0xff]
      %v647 = vld [vmem:[%s1 + $0x2a0] sm:$0xff]
      %v648 = vld [vmem:[%s1 + $0x2a8] sm:$0xff]
      %v649 = vld [vmem:[%s1 + $0x2b0] sm:$0xff]
      %v650 = vld [vmem:[%s1 + $0x2b8] sm:$0xff]
      %v651 = vld [vmem:[%s1 + $0x2c0] sm:$0xff]
      %v652 = vld [vmem:[%s1 + $0x2c8] sm:$0xff]
      %v653 = vld [vmem:[%s1 + $0x2d0] sm:$0xff]
      %v654 = vld [vmem:[%s1 + $0x2d8] sm:$0xff]
      %v655 = vld [vmem:[%s1 + $0x2e0] sm:$0xff]
      %v656 = vld [vmem:[%s1 + $0x2e8] sm:$0xff]
      %v657 = vld [vmem:[%s1 + $0x2f0] sm:$0xff]
      %v658 = vld [vmem:[%s1 + $0x2f8] sm:$0xff]
      %v659 = vld [vmem:[%s1 + $0x300] sm:$0xff]
      %v660 = vld [vmem:[%s1 + $0x308] sm:$0xff]
      %v661 = vld [vmem:[%s1 + $0x310] sm:$0xff]
      %v662 = vld [vmem:[%s1 + $0x318] sm:$0xff]
      %v663 = vld [vmem:[%s1 + $0x320] sm:$0xff]
      %v664 = vld [vmem:[%s1 + $0x328] sm:$0xff]
      %v665 = vld [vmem:[%s1 + $0x330] sm:$0xff]
      %v666 = vld [vmem:[%s1 + $0x338] sm:$0xff]
      %v667 = vld [vmem:[%s1 + $0x340] sm:$0xff]
      %v668 = vld [vmem:[%s1 + $0x348] sm:$0xff]
      %v669 = vld [vmem:[%s1 + $0x350] sm:$0xff]
      %v670 = vld [vmem:[%s1 + $0x358] sm:$0xff]
      %v671 = vld [vmem:[%s1 + $0x360] sm:$0xff]
      %v672 = vld [vmem:[%s1 + $0x368] sm:$0xff]
      %v673 = vld [vmem:[%s1 + $0x370] sm:$0xff]
      %v674 = vld [vmem:[%s1 + $0x378] sm:$0xff]
      %v675 = vld [vmem:[%s2] sm:$0x1]
      %v677 = vlaneseq
      %v678 = vshrl.u32 %v677, 7
      %v679 = vsub.s32 0, %v678
      %v680 = vrot.slane %v675, %v679
      %682 = vmatprep.subr.mxu0 0.0
      %683 = vmatpush1.msra.mxu0 %v578
      %684 = vmatprep.subr.mxu0 0.0
      %685 = vmatpush1.msra.mxu0 %v577
      %686 = vmatprep.subr.mxu0 0.0
      %687 = vmatpush1.msra.mxu0 %v576
      %688 = vmatprep.subr.mxu0 0.0
      %689 = vmatpush1.msra.mxu0 %v575
      %690 = vmatprep.subr.mxu0 0.0
      %691 = vmatpush1.msra.mxu0 %v574
      %692 = vmatprep.subr.mxu0 0.0
      %693 = vmatpush1.msra.mxu0 %v573
      %694 = vmatprep.subr.mxu0 0.0
      %695 = vmatpush1.msra.mxu0 %v572
      %696 = vmatprep.subr.mxu0 0.0
      %697 = vmatpush1.msra.mxu0 %v571
      %698 = vmatprep.subr.mxu0 0.0
      %699 = vmatpush1.msra.mxu0 %v570
      %700 = vmatprep.subr.mxu0 0.0
      %701 = vmatpush1.msra.mxu0 %v569
      %702 = vmatprep.subr.mxu0 0.0
      %703 = vmatpush1.msra.mxu0 %v568
      %704 = vmatprep.subr.mxu0 0.0
      %705 = vmatpush1.msra.mxu0 %v567
      %706 = vmatprep.subr.mxu0 0.0
      %707 = vmatpush1.msra.mxu0 %v566
      %708 = vmatprep.subr.mxu0 0.0
      %709 = vmatpush1.msra.mxu0 %v565
      %710 = vmatprep.subr.mxu0 0.0
      %711 = vmatpush1.msra.mxu0 %v564
      %712 = vmatprep.subr.mxu0 0.0
      %713 = vmatpush1.msra.mxu0 %v563
      %714 = vmatprep.subr.mxu0 0.0
      %715 = vmatpush2.msra.mxu0 %v594
      %716 = vmatprep.subr.mxu0 0.0
      %717 = vmatpush2.msra.mxu0 %v593
      %718 = vmatprep.subr.mxu0 0.0
      %719 = vmatpush2.msra.mxu0 %v592
      %720 = vmatprep.subr.mxu0 0.0
      %721 = vmatpush2.msra.mxu0 %v591
      %722 = vmatprep.subr.mxu0 0.0
      %723 = vmatpush2.msra.mxu0 %v590
      %724 = vmatprep.subr.mxu0 0.0
      %725 = vmatpush2.msra.mxu0 %v589
      %726 = vmatprep.subr.mxu0 0.0
      %727 = vmatpush2.msra.mxu0 %v588
      %728 = vmatprep.subr.mxu0 0.0
      %729 = vmatpush2.msra.mxu0 %v587
      %730 = vmatprep.subr.mxu0 0.0
      %731 = vmatpush2.msra.mxu0 %v586
      %732 = vmatprep.subr.mxu0 0.0
      %733 = vmatpush2.msra.mxu0 %v585
      %734 = vmatprep.subr.mxu0 0.0
      %735 = vmatpush2.msra.mxu0 %v584
      %736 = vmatprep.subr.mxu0 0.0
      %737 = vmatpush2.msra.mxu0 %v583
      %738 = vmatprep.subr.mxu0 0.0
      %739 = vmatpush2.msra.mxu0 %v582
      %740 = vmatprep.subr.mxu0 0.0
      %741 = vmatpush2.msra.mxu0 %v581
      %742 = vmatprep.subr.mxu0 0.0
      %743 = vmatpush2.msra.mxu0 %v580
      %744 = vmatprep.subr.mxu0 0.0
      %745 = vmatpush2.msra.mxu0 %v579
      %746 = vmatprep.mubr.f32.mxu0 %v340
      %747 = vmatmul.mubr.f32.gmra.mxu0 %v339
      %v748 = vpop.f32.mrf.mxu0
      %v749 = vadd.f32 %v680, %v748
      %v750 = vpop.f32.mrf.mxu0
      %751 = vmatprep.mubr.f32.mxu0 %v347
      %752 = vmatmul.mubr.f32.gmra.mxu0 %v346
      %v753 = vpop.f32.mrf.mxu0
      %v754 = vadd.f32 %v680, %v753
      %v755 = vpop.f32.mrf.mxu0
      %756 = vmatprep.mubr.f32.mxu0 %v354
      %757 = vmatmul.mubr.f32.gmra.mxu0 %v353
      %v758 = vpop.f32.mrf.mxu0
      %v759 = vadd.f32 %v680, %v758
      %v760 = vpop.f32.mrf.mxu0
      %761 = vmatprep.mubr.f32.mxu0 %v361
      %762 = vmatmul.mubr.f32.gmra.mxu0 %v360
      %v763 = vpop.f32.mrf.mxu0
      %v764 = vadd.f32 %v680, %v763
      %v765 = vpop.f32.mrf.mxu0
      %766 = vmatprep.mubr.f32.mxu0 %v368
      %767 = vmatmul.mubr.f32.gmra.mxu0 %v367
      %v768 = vpop.f32.mrf.mxu0
      %v769 = vadd.f32 %v680, %v768
      %v770 = vpop.f32.mrf.mxu0
      %771 = vmatprep.mubr.f32.mxu0 %v375
      %772 = vmatmul.mubr.f32.gmra.mxu0 %v374
      %v773 = vpop.f32.mrf.mxu0
      %v774 = vadd.f32 %v680, %v773
      %v775 = vpop.f32.mrf.mxu0
      %776 = vmatprep.mubr.f32.mxu0 %v382
      %777 = vmatmul.mubr.f32.gmra.mxu0 %v381
      %v778 = vpop.f32.mrf.mxu0
      %v779 = vadd.f32 %v680, %v778
      %v780 = vpop.f32.mrf.mxu0
      %781 = vmatprep.mubr.f32.mxu0 %v389
      %782 = vmatmul.mubr.f32.gmra.mxu0 %v388
      %v783 = vpop.f32.mrf.mxu0
      %v784 = vadd.f32 %v680, %v783
      %v785 = vpop.f32.mrf.mxu0
      %786 = vmatprep.mubr.f32.mxu0 %v396
      %787 = vmatmul.mubr.f32.gmra.mxu0 %v395
      %v788 = vpop.f32.mrf.mxu0
      %v789 = vadd.f32 %v680, %v788
      %v790 = vpop.f32.mrf.mxu0
      %791 = vmatprep.mubr.f32.mxu0 %v403
      %792 = vmatmul.mubr.f32.gmra.mxu0 %v402
      %v793 = vpop.f32.mrf.mxu0
      %v794 = vadd.f32 %v680, %v793
      %v795 = vpop.f32.mrf.mxu0
      %796 = vmatprep.mubr.f32.mxu0 %v410
      %797 = vmatmul.mubr.f32.gmra.mxu0 %v409
      %v798 = vpop.f32.mrf.mxu0
      %v799 = vadd.f32 %v680, %v798
      %v800 = vpop.f32.mrf.mxu0
      %801 = vmatprep.mubr.f32.mxu0 %v417
      %802 = vmatmul.mubr.f32.gmra.mxu0 %v416
      %v803 = vpop.f32.mrf.mxu0
      %v804 = vadd.f32 %v680, %v803
      %v805 = vpop.f32.mrf.mxu0
      %806 = vmatprep.mubr.f32.mxu0 %v424
      %807 = vmatmul.mubr.f32.gmra.mxu0 %v423
      %v808 = vpop.f32.mrf.mxu0
      %v809 = vadd.f32 %v680, %v808
      %v810 = vpop.f32.mrf.mxu0
      %811 = vmatprep.mubr.f32.mxu0 %v431
      %812 = vmatmul.mubr.f32.gmra.mxu0 %v430
      %v813 = vpop.f32.mrf.mxu0
      %v814 = vadd.f32 %v680, %v813
      %v815 = vpop.f32.mrf.mxu0
      %816 = vmatprep.mubr.f32.mxu0 %v438
      %817 = vmatmul.mubr.f32.gmra.mxu0 %v437
      %v818 = vpop.f32.mrf.mxu0
      %v819 = vadd.f32 %v680, %v818
      %v820 = vpop.f32.mrf.mxu0
      %821 = vmatprep.mubr.f32.mxu0 %v445
      %822 = vmatmul.mubr.f32.gmra.mxu0 %v444
      %v823 = vpop.f32.mrf.mxu0
      %v824 = vadd.f32 %v680, %v823
      %v825 = vpop.f32.mrf.mxu0
      %826 = vmatprep.mubr.f32.mxu0 %v452
      %827 = vmatmul.mubr.f32.gmra.mxu0 %v451
      %v828 = vpop.f32.mrf.mxu0
      %v829 = vadd.f32 %v680, %v828
      %v830 = vpop.f32.mrf.mxu0
      %831 = vmatprep.mubr.f32.mxu0 %v459
      %832 = vmatmul.mubr.f32.gmra.mxu0 %v458
      %v833 = vpop.f32.mrf.mxu0
      %v834 = vadd.f32 %v680, %v833
      %v835 = vpop.f32.mrf.mxu0
      %836 = vmatprep.mubr.f32.mxu0 %v466
      %837 = vmatmul.mubr.f32.gmra.mxu0 %v465
      %v838 = vpop.f32.mrf.mxu0
      %v839 = vadd.f32 %v680, %v838
      %v840 = vpop.f32.mrf.mxu0
      %841 = vmatprep.mubr.f32.mxu0 %v473
      %842 = vmatmul.mubr.f32.gmra.mxu0 %v472
      %v843 = vpop.f32.mrf.mxu0
      %v844 = vadd.f32 %v680, %v843
      %v845 = vpop.f32.mrf.mxu0
      %846 = vmatprep.mubr.f32.mxu0 %v480
      %847 = vmatmul.mubr.f32.gmra.mxu0 %v479
      %v848 = vpop.f32.mrf.mxu0
      %v849 = vadd.f32 %v680, %v848
      %v850 = vpop.f32.mrf.mxu0
      %851 = vmatprep.mubr.f32.mxu0 %v487
      %852 = vmatmul.mubr.f32.gmra.mxu0 %v486
      %v853 = vpop.f32.mrf.mxu0
      %v854 = vadd.f32 %v680, %v853
      %v855 = vpop.f32.mrf.mxu0
      %856 = vmatprep.mubr.f32.mxu0 %v494
      %857 = vmatmul.mubr.f32.gmra.mxu0 %v493
      %v858 = vpop.f32.mrf.mxu0
      %v859 = vadd.f32 %v680, %v858
      %v860 = vpop.f32.mrf.mxu0
      %861 = vmatprep.mubr.f32.mxu0 %v501
      %862 = vmatmul.mubr.f32.gmra.mxu0 %v500
      %v863 = vpop.f32.mrf.mxu0
      %v864 = vadd.f32 %v680, %v863
      %v865 = vpop.f32.mrf.mxu0
      %866 = vmatprep.mubr.f32.mxu0 %v508
      %867 = vmatmul.mubr.f32.gmra.mxu0 %v507
      %v868 = vpop.f32.mrf.mxu0
      %v869 = vadd.f32 %v680, %v868
      %v870 = vpop.f32.mrf.mxu0
      %871 = vmatprep.mubr.f32.mxu0 %v515
      %872 = vmatmul.mubr.f32.gmra.mxu0 %v514
      %v873 = vpop.f32.mrf.mxu0
      %v874 = vadd.f32 %v680, %v873
      %v875 = vpop.f32.mrf.mxu0
      %876 = vmatprep.mubr.f32.mxu0 %v522
      %877 = vmatmul.mubr.f32.gmra.mxu0 %v521
      %v878 = vpop.f32.mrf.mxu0
      %v879 = vadd.f32 %v680, %v878
      %v880 = vpop.f32.mrf.mxu0
      %881 = vmatprep.mubr.f32.mxu0 %v529
      %882 = vmatmul.mubr.f32.gmra.mxu0 %v528
      %v883 = vpop.f32.mrf.mxu0
      %v884 = vadd.f32 %v680, %v883
      %v885 = vpop.f32.mrf.mxu0
      %886 = vmatprep.mubr.f32.mxu0 %v536
      %887 = vmatmul.mubr.f32.gmra.mxu0 %v535
      %v888 = vpop.f32.mrf.mxu0
      %v889 = vadd.f32 %v680, %v888
      %v890 = vpop.f32.mrf.mxu0
      %891 = vmatprep.mubr.f32.mxu0 %v543
      %892 = vmatmul.mubr.f32.gmra.mxu0 %v542
      %v893 = vpop.f32.mrf.mxu0
      %v894 = vadd.f32 %v680, %v893
      %v895 = vpop.f32.mrf.mxu0
      %896 = vmatprep.mubr.f32.mxu0 %v550
      %897 = vmatmul.mubr.f32.gmra.mxu0 %v549
      %v898 = vpop.f32.mrf.mxu0
      %v899 = vadd.f32 %v680, %v898
      %v900 = vpop.f32.mrf.mxu0
      %901 = vmatprep.mubr.f32.mxu0 %v557
      %902 = vmatmul.mubr.f32.gmra.mxu0 %v556
      %v903 = vpop.f32.mrf.mxu0
      %v904 = vadd.f32 %v680, %v903
      %v905 = vpop.f32.mrf.mxu0
      %906 = vdwg.mxu0
      %907 = vmatprep.subr.mxu0 0.0
      %908 = vmatpush1.msra.mxu0 %v610
      %909 = vmatprep.subr.mxu0 0.0
      %910 = vmatpush1.msra.mxu0 %v609
      %911 = vmatprep.subr.mxu0 0.0
      %912 = vmatpush1.msra.mxu0 %v608
      %913 = vmatprep.subr.mxu0 0.0
      %914 = vmatpush1.msra.mxu0 %v607
      %915 = vmatprep.subr.mxu0 0.0
      %916 = vmatpush1.msra.mxu0 %v606
      %917 = vmatprep.subr.mxu0 0.0
      %918 = vmatpush1.msra.mxu0 %v605
      %919 = vmatprep.subr.mxu0 0.0
      %920 = vmatpush1.msra.mxu0 %v604
      %921 = vmatprep.subr.mxu0 0.0
      %922 = vmatpush1.msra.mxu0 %v603
      %923 = vmatprep.subr.mxu0 0.0
      %924 = vmatpush1.msra.mxu0 %v602
      %925 = vmatprep.subr.mxu0 0.0
      %926 = vmatpush1.msra.mxu0 %v601
      %927 = vmatprep.subr.mxu0 0.0
      %928 = vmatpush1.msra.mxu0 %v600
      %929 = vmatprep.subr.mxu0 0.0
      %930 = vmatpush1.msra.mxu0 %v599
      %931 = vmatprep.subr.mxu0 0.0
      %932 = vmatpush1.msra.mxu0 %v598
      %933 = vmatprep.subr.mxu0 0.0
      %934 = vmatpush1.msra.mxu0 %v597
      %935 = vmatprep.subr.mxu0 0.0
      %936 = vmatpush1.msra.mxu0 %v596
      %937 = vmatprep.subr.mxu0 0.0
      %938 = vmatpush1.msra.mxu0 %v595
      %939 = vmatprep.subr.mxu0 0.0
      %940 = vmatpush2.msra.mxu0 %v626
      %941 = vmatprep.subr.mxu0 0.0
      %942 = vmatpush2.msra.mxu0 %v625
      %943 = vmatprep.subr.mxu0 0.0
      %944 = vmatpush2.msra.mxu0 %v624
      %945 = vmatprep.subr.mxu0 0.0
      %946 = vmatpush2.msra.mxu0 %v623
      %947 = vmatprep.subr.mxu0 0.0
      %948 = vmatpush2.msra.mxu0 %v622
      %949 = vmatprep.subr.mxu0 0.0
      %950 = vmatpush2.msra.mxu0 %v621
      %951 = vmatprep.subr.mxu0 0.0
      %952 = vmatpush2.msra.mxu0 %v620
      %953 = vmatprep.subr.mxu0 0.0
      %954 = vmatpush2.msra.mxu0 %v619
      %955 = vmatprep.subr.mxu0 0.0
      %956 = vmatpush2.msra.mxu0 %v618
      %957 = vmatprep.subr.mxu0 0.0
      %958 = vmatpush2.msra.mxu0 %v617
      %959 = vmatprep.subr.mxu0 0.0
      %960 = vmatpush2.msra.mxu0 %v616
      %961 = vmatprep.subr.mxu0 0.0
      %962 = vmatpush2.msra.mxu0 %v615
      %963 = vmatprep.subr.mxu0 0.0
      %964 = vmatpush2.msra.mxu0 %v614
      %965 = vmatprep.subr.mxu0 0.0
      %966 = vmatpush2.msra.mxu0 %v613
      %967 = vmatprep.subr.mxu0 0.0
      %968 = vmatpush2.msra.mxu0 %v612
      %969 = vmatprep.subr.mxu0 0.0
      %970 = vmatpush2.msra.mxu0 %v611
      %971 = vmatprep.mubr.f32.mxu0 %v342
      %972 = vmatmul.mubr.f32.gmra.mxu0 %v341
      %v973 = vpop.f32.mrf.mxu0
      %v974 = vadd.f32 %v749, %v973
      %v975 = vpop.f32.mrf.mxu0
      %976 = vmatprep.mubr.f32.mxu0 %v349
      %977 = vmatmul.mubr.f32.gmra.mxu0 %v348
      %v978 = vpop.f32.mrf.mxu0
      %v979 = vadd.f32 %v754, %v978
      %v980 = vpop.f32.mrf.mxu0
      %981 = vmatprep.mubr.f32.mxu0 %v356
      %982 = vmatmul.mubr.f32.gmra.mxu0 %v355
      %v983 = vpop.f32.mrf.mxu0
      %v984 = vadd.f32 %v759, %v983
      %v985 = vpop.f32.mrf.mxu0
      %986 = vmatprep.mubr.f32.mxu0 %v363
      %987 = vmatmul.mubr.f32.gmra.mxu0 %v362
      %v988 = vpop.f32.mrf.mxu0
      %v989 = vadd.f32 %v764, %v988
      %v990 = vpop.f32.mrf.mxu0
      %991 = vmatprep.mubr.f32.mxu0 %v370
      %992 = vmatmul.mubr.f32.gmra.mxu0 %v369
      %v993 = vpop.f32.mrf.mxu0
      %v994 = vadd.f32 %v769, %v993
      %v995 = vpop.f32.mrf.mxu0
      %996 = vmatprep.mubr.f32.mxu0 %v377
      %997 = vmatmul.mubr.f32.gmra.mxu0 %v376
      %v998 = vpop.f32.mrf.mxu0
      %v999 = vadd.f32 %v774, %v998
      %v1000 = vpop.f32.mrf.mxu0
      %1001 = vmatprep.mubr.f32.mxu0 %v384
      %1002 = vmatmul.mubr.f32.gmra.mxu0 %v383
      %v1003 = vpop.f32.mrf.mxu0
      %v1004 = vadd.f32 %v779, %v1003
      %v1005 = vpop.f32.mrf.mxu0
      %1006 = vmatprep.mubr.f32.mxu0 %v391
      %1007 = vmatmul.mubr.f32.gmra.mxu0 %v390
      %v1008 = vpop.f32.mrf.mxu0
      %v1009 = vadd.f32 %v784, %v1008
      %v1010 = vpop.f32.mrf.mxu0
      %1011 = vmatprep.mubr.f32.mxu0 %v398
      %1012 = vmatmul.mubr.f32.gmra.mxu0 %v397
      %v1013 = vpop.f32.mrf.mxu0
      %v1014 = vadd.f32 %v789, %v1013
      %v1015 = vpop.f32.mrf.mxu0
      %1016 = vmatprep.mubr.f32.mxu0 %v405
      %1017 = vmatmul.mubr.f32.gmra.mxu0 %v404
      %v1018 = vpop.f32.mrf.mxu0
      %v1019 = vadd.f32 %v794, %v1018
      %v1020 = vpop.f32.mrf.mxu0
      %1021 = vmatprep.mubr.f32.mxu0 %v412
      %1022 = vmatmul.mubr.f32.gmra.mxu0 %v411
      %v1023 = vpop.f32.mrf.mxu0
      %v1024 = vadd.f32 %v799, %v1023
      %v1025 = vpop.f32.mrf.mxu0
      %1026 = vmatprep.mubr.f32.mxu0 %v419
      %1027 = vmatmul.mubr.f32.gmra.mxu0 %v418
      %v1028 = vpop.f32.mrf.mxu0
      %v1029 = vadd.f32 %v804, %v1028
      %v1030 = vpop.f32.mrf.mxu0
      %1031 = vmatprep.mubr.f32.mxu0 %v426
      %1032 = vmatmul.mubr.f32.gmra.mxu0 %v425
      %v1033 = vpop.f32.mrf.mxu0
      %v1034 = vadd.f32 %v809, %v1033
      %v1035 = vpop.f32.mrf.mxu0
      %1036 = vmatprep.mubr.f32.mxu0 %v433
      %1037 = vmatmul.mubr.f32.gmra.mxu0 %v432
      %v1038 = vpop.f32.mrf.mxu0
      %v1039 = vadd.f32 %v814, %v1038
      %v1040 = vpop.f32.mrf.mxu0
      %1041 = vmatprep.mubr.f32.mxu0 %v440
      %1042 = vmatmul.mubr.f32.gmra.mxu0 %v439
      %v1043 = vpop.f32.mrf.mxu0
      %v1044 = vadd.f32 %v819, %v1043
      %v1045 = vpop.f32.mrf.mxu0
      %1046 = vmatprep.mubr.f32.mxu0 %v447
      %1047 = vmatmul.mubr.f32.gmra.mxu0 %v446
      %v1048 = vpop.f32.mrf.mxu0
      %v1049 = vadd.f32 %v824, %v1048
      %v1050 = vpop.f32.mrf.mxu0
      %1051 = vmatprep.mubr.f32.mxu0 %v454
      %1052 = vmatmul.mubr.f32.gmra.mxu0 %v453
      %v1053 = vpop.f32.mrf.mxu0
      %v1054 = vadd.f32 %v829, %v1053
      %v1055 = vpop.f32.mrf.mxu0
      %1056 = vmatprep.mubr.f32.mxu0 %v461
      %1057 = vmatmul.mubr.f32.gmra.mxu0 %v460
      %v1058 = vpop.f32.mrf.mxu0
      %v1059 = vadd.f32 %v834, %v1058
      %v1060 = vpop.f32.mrf.mxu0
      %1061 = vmatprep.mubr.f32.mxu0 %v468
      %1062 = vmatmul.mubr.f32.gmra.mxu0 %v467
      %v1063 = vpop.f32.mrf.mxu0
      %v1064 = vadd.f32 %v839, %v1063
      %v1065 = vpop.f32.mrf.mxu0
      %1066 = vmatprep.mubr.f32.mxu0 %v475
      %1067 = vmatmul.mubr.f32.gmra.mxu0 %v474
      %v1068 = vpop.f32.mrf.mxu0
      %v1069 = vadd.f32 %v844, %v1068
      %v1070 = vpop.f32.mrf.mxu0
      %1071 = vmatprep.mubr.f32.mxu0 %v482
      %1072 = vmatmul.mubr.f32.gmra.mxu0 %v481
      %v1073 = vpop.f32.mrf.mxu0
      %v1074 = vadd.f32 %v849, %v1073
      %v1075 = vpop.f32.mrf.mxu0
      %1076 = vmatprep.mubr.f32.mxu0 %v489
      %1077 = vmatmul.mubr.f32.gmra.mxu0 %v488
      %v1078 = vpop.f32.mrf.mxu0
      %v1079 = vadd.f32 %v854, %v1078
      %v1080 = vpop.f32.mrf.mxu0
      %1081 = vmatprep.mubr.f32.mxu0 %v496
      %1082 = vmatmul.mubr.f32.gmra.mxu0 %v495
      %v1083 = vpop.f32.mrf.mxu0
      %v1084 = vadd.f32 %v859, %v1083
      %v1085 = vpop.f32.mrf.mxu0
      %1086 = vmatprep.mubr.f32.mxu0 %v503
      %1087 = vmatmul.mubr.f32.gmra.mxu0 %v502
      %v1088 = vpop.f32.mrf.mxu0
      %v1089 = vadd.f32 %v864, %v1088
      %v1090 = vpop.f32.mrf.mxu0
      %1091 = vmatprep.mubr.f32.mxu0 %v510
      %1092 = vmatmul.mubr.f32.gmra.mxu0 %v509
      %v1093 = vpop.f32.mrf.mxu0
      %v1094 = vadd.f32 %v869, %v1093
      %v1095 = vpop.f32.mrf.mxu0
      %1096 = vmatprep.mubr.f32.mxu0 %v517
      %1097 = vmatmul.mubr.f32.gmra.mxu0 %v516
      %v1098 = vpop.f32.mrf.mxu0
      %v1099 = vadd.f32 %v874, %v1098
      %v1100 = vpop.f32.mrf.mxu0
      %1101 = vmatprep.mubr.f32.mxu0 %v524
      %1102 = vmatmul.mubr.f32.gmra.mxu0 %v523
      %v1103 = vpop.f32.mrf.mxu0
      %v1104 = vadd.f32 %v879, %v1103
      %v1105 = vpop.f32.mrf.mxu0
      %1106 = vmatprep.mubr.f32.mxu0 %v531
      %1107 = vmatmul.mubr.f32.gmra.mxu0 %v530
      %v1108 = vpop.f32.mrf.mxu0
      %v1109 = vadd.f32 %v884, %v1108
      %v1110 = vpop.f32.mrf.mxu0
      %1111 = vmatprep.mubr.f32.mxu0 %v538
      %1112 = vmatmul.mubr.f32.gmra.mxu0 %v537
      %v1113 = vpop.f32.mrf.mxu0
      %v1114 = vadd.f32 %v889, %v1113
      %v1115 = vpop.f32.mrf.mxu0
      %1116 = vmatprep.mubr.f32.mxu0 %v545
      %1117 = vmatmul.mubr.f32.gmra.mxu0 %v544
      %v1118 = vpop.f32.mrf.mxu0
      %v1119 = vadd.f32 %v894, %v1118
      %v1120 = vpop.f32.mrf.mxu0
      %1121 = vmatprep.mubr.f32.mxu0 %v552
      %1122 = vmatmul.mubr.f32.gmra.mxu0 %v551
      %v1123 = vpop.f32.mrf.mxu0
      %v1124 = vadd.f32 %v899, %v1123
      %v1125 = vpop.f32.mrf.mxu0
      %1126 = vmatprep.mubr.f32.mxu0 %v559
      %1127 = vmatmul.mubr.f32.gmra.mxu0 %v558
      %v1128 = vpop.f32.mrf.mxu0
      %v1129 = vadd.f32 %v904, %v1128
      %v1130 = vpop.f32.mrf.mxu0
      %1131 = vdwg.mxu0
      %1132 = vmatprep.subr.mxu0 0.0
      %1133 = vmatpush1.msra.mxu0 %v642
      %1134 = vmatprep.subr.mxu0 0.0
      %1135 = vmatpush1.msra.mxu0 %v641
      %1136 = vmatprep.subr.mxu0 0.0
      %1137 = vmatpush1.msra.mxu0 %v640
      %1138 = vmatprep.subr.mxu0 0.0
      %1139 = vmatpush1.msra.mxu0 %v639
      %1140 = vmatprep.subr.mxu0 0.0
      %1141 = vmatpush1.msra.mxu0 %v638
      %1142 = vmatprep.subr.mxu0 0.0
      %1143 = vmatpush1.msra.mxu0 %v637
      %1144 = vmatprep.subr.mxu0 0.0
      %1145 = vmatpush1.msra.mxu0 %v636
      %1146 = vmatprep.subr.mxu0 0.0
      %1147 = vmatpush1.msra.mxu0 %v635
      %1148 = vmatprep.subr.mxu0 0.0
      %1149 = vmatpush1.msra.mxu0 %v634
      %1150 = vmatprep.subr.mxu0 0.0
      %1151 = vmatpush1.msra.mxu0 %v633
      %1152 = vmatprep.subr.mxu0 0.0
      %1153 = vmatpush1.msra.mxu0 %v632
      %1154 = vmatprep.subr.mxu0 0.0
      %1155 = vmatpush1.msra.mxu0 %v631
      %1156 = vmatprep.subr.mxu0 0.0
      %1157 = vmatpush1.msra.mxu0 %v630
      %1158 = vmatprep.subr.mxu0 0.0
      %1159 = vmatpush1.msra.mxu0 %v629
      %1160 = vmatprep.subr.mxu0 0.0
      %1161 = vmatpush1.msra.mxu0 %v628
      %1162 = vmatprep.subr.mxu0 0.0
      %1163 = vmatpush1.msra.mxu0 %v627
      %1164 = vmatprep.subr.mxu0 0.0
      %1165 = vmatpush2.msra.mxu0 %v658
      %1166 = vmatprep.subr.mxu0 0.0
      %1167 = vmatpush2.msra.mxu0 %v657
      %1168 = vmatprep.subr.mxu0 0.0
      %1169 = vmatpush2.msra.mxu0 %v656
      %1170 = vmatprep.subr.mxu0 0.0
      %1171 = vmatpush2.msra.mxu0 %v655
      %1172 = vmatprep.subr.mxu0 0.0
      %1173 = vmatpush2.msra.mxu0 %v654
      %1174 = vmatprep.subr.mxu0 0.0
      %1175 = vmatpush2.msra.mxu0 %v653
      %1176 = vmatprep.subr.mxu0 0.0
      %1177 = vmatpush2.msra.mxu0 %v652
      %1178 = vmatprep.subr.mxu0 0.0
      %1179 = vmatpush2.msra.mxu0 %v651
      %1180 = vmatprep.subr.mxu0 0.0
      %1181 = vmatpush2.msra.mxu0 %v650
      %1182 = vmatprep.subr.mxu0 0.0
      %1183 = vmatpush2.msra.mxu0 %v649
      %1184 = vmatprep.subr.mxu0 0.0
      %1185 = vmatpush2.msra.mxu0 %v648
      %1186 = vmatprep.subr.mxu0 0.0
      %1187 = vmatpush2.msra.mxu0 %v647
      %1188 = vmatprep.subr.mxu0 0.0
      %1189 = vmatpush2.msra.mxu0 %v646
      %1190 = vmatprep.subr.mxu0 0.0
      %1191 = vmatpush2.msra.mxu0 %v645
      %1192 = vmatprep.subr.mxu0 0.0
      %1193 = vmatpush2.msra.mxu0 %v644
      %1194 = vmatprep.subr.mxu0 0.0
      %1195 = vmatpush2.msra.mxu0 %v643
      %1196 = vmatprep.mubr.f32.mxu0 %v344
      %1197 = vmatmul.mubr.f32.gmra.mxu0 %v343
      %v1198 = vpop.f32.mrf.mxu0
      %v1199 = vadd.f32 %v974, %v1198
      %v1200 = vpop.f32.mrf.mxu0
      %1201 = vmatprep.mubr.f32.mxu0 %v351
      %1202 = vmatmul.mubr.f32.gmra.mxu0 %v350
      %v1203 = vpop.f32.mrf.mxu0
      %v1204 = vadd.f32 %v979, %v1203
      %v1205 = vpop.f32.mrf.mxu0
      %1206 = vmatprep.mubr.f32.mxu0 %v358
      %1207 = vmatmul.mubr.f32.gmra.mxu0 %v357
      %v1208 = vpop.f32.mrf.mxu0
      %v1209 = vadd.f32 %v984, %v1208
      %v1210 = vpop.f32.mrf.mxu0
      %1211 = vmatprep.mubr.f32.mxu0 %v365
      %1212 = vmatmul.mubr.f32.gmra.mxu0 %v364
      %v1213 = vpop.f32.mrf.mxu0
      %v1214 = vadd.f32 %v989, %v1213
      %v1215 = vpop.f32.mrf.mxu0
      %1216 = vmatprep.mubr.f32.mxu0 %v372
      %1217 = vmatmul.mubr.f32.gmra.mxu0 %v371
      %v1218 = vpop.f32.mrf.mxu0
      %v1219 = vadd.f32 %v994, %v1218
      %v1220 = vpop.f32.mrf.mxu0
      %1221 = vmatprep.mubr.f32.mxu0 %v379
      %1222 = vmatmul.mubr.f32.gmra.mxu0 %v378
      %v1223 = vpop.f32.mrf.mxu0
      %v1224 = vadd.f32 %v999, %v1223
      %v1225 = vpop.f32.mrf.mxu0
      %1226 = vmatprep.mubr.f32.mxu0 %v386
      %1227 = vmatmul.mubr.f32.gmra.mxu0 %v385
      %v1228 = vpop.f32.mrf.mxu0
      %v1229 = vadd.f32 %v1004, %v1228
      %v1230 = vpop.f32.mrf.mxu0
      %1231 = vmatprep.mubr.f32.mxu0 %v393
      %1232 = vmatmul.mubr.f32.gmra.mxu0 %v392
      %v1233 = vpop.f32.mrf.mxu0
      %v1234 = vadd.f32 %v1009, %v1233
      %v1235 = vpop.f32.mrf.mxu0
      %1236 = vmatprep.mubr.f32.mxu0 %v400
      %1237 = vmatmul.mubr.f32.gmra.mxu0 %v399
      %v1238 = vpop.f32.mrf.mxu0
      %v1239 = vadd.f32 %v1014, %v1238
      %v1240 = vpop.f32.mrf.mxu0
      %1241 = vmatprep.mubr.f32.mxu0 %v407
      %1242 = vmatmul.mubr.f32.gmra.mxu0 %v406
      %v1243 = vpop.f32.mrf.mxu0
      %v1244 = vadd.f32 %v1019, %v1243
      %v1245 = vpop.f32.mrf.mxu0
      %1246 = vmatprep.mubr.f32.mxu0 %v414
      %1247 = vmatmul.mubr.f32.gmra.mxu0 %v413
      %v1248 = vpop.f32.mrf.mxu0
      %v1249 = vadd.f32 %v1024, %v1248
      %v1250 = vpop.f32.mrf.mxu0
      %1251 = vmatprep.mubr.f32.mxu0 %v421
      %1252 = vmatmul.mubr.f32.gmra.mxu0 %v420
      %v1253 = vpop.f32.mrf.mxu0
      %v1254 = vadd.f32 %v1029, %v1253
      %v1255 = vpop.f32.mrf.mxu0
      %1256 = vmatprep.mubr.f32.mxu0 %v428
      %1257 = vmatmul.mubr.f32.gmra.mxu0 %v427
      %v1258 = vpop.f32.mrf.mxu0
      %v1259 = vadd.f32 %v1034, %v1258
      %v1260 = vpop.f32.mrf.mxu0
      %1261 = vmatprep.mubr.f32.mxu0 %v435
      %1262 = vmatmul.mubr.f32.gmra.mxu0 %v434
      %v1263 = vpop.f32.mrf.mxu0
      %v1264 = vadd.f32 %v1039, %v1263
      %v1265 = vpop.f32.mrf.mxu0
      %1266 = vmatprep.mubr.f32.mxu0 %v442
      %1267 = vmatmul.mubr.f32.gmra.mxu0 %v441
      %v1268 = vpop.f32.mrf.mxu0
      %v1269 = vadd.f32 %v1044, %v1268
      %v1270 = vpop.f32.mrf.mxu0
      %1271 = vmatprep.mubr.f32.mxu0 %v449
      %1272 = vmatmul.mubr.f32.gmra.mxu0 %v448
      %v1273 = vpop.f32.mrf.mxu0
      %v1274 = vadd.f32 %v1049, %v1273
      %v1275 = vpop.f32.mrf.mxu0
      %1276 = vmatprep.mubr.f32.mxu0 %v456
      %1277 = vmatmul.mubr.f32.gmra.mxu0 %v455
      %v1278 = vpop.f32.mrf.mxu0
      %v1279 = vadd.f32 %v1054, %v1278
      %v1280 = vpop.f32.mrf.mxu0
      %1281 = vmatprep.mubr.f32.mxu0 %v463
      %1282 = vmatmul.mubr.f32.gmra.mxu0 %v462
      %v1283 = vpop.f32.mrf.mxu0
      %v1284 = vadd.f32 %v1059, %v1283
      %v1285 = vpop.f32.mrf.mxu0
      %1286 = vmatprep.mubr.f32.mxu0 %v470
      %1287 = vmatmul.mubr.f32.gmra.mxu0 %v469
      %v1288 = vpop.f32.mrf.mxu0
      %v1289 = vadd.f32 %v1064, %v1288
      %v1290 = vpop.f32.mrf.mxu0
      %1291 = vmatprep.mubr.f32.mxu0 %v477
      %1292 = vmatmul.mubr.f32.gmra.mxu0 %v476
      %v1293 = vpop.f32.mrf.mxu0
      %v1294 = vadd.f32 %v1069, %v1293
      %v1295 = vpop.f32.mrf.mxu0
      %1296 = vmatprep.mubr.f32.mxu0 %v484
      %1297 = vmatmul.mubr.f32.gmra.mxu0 %v483
      %v1298 = vpop.f32.mrf.mxu0
      %v1299 = vadd.f32 %v1074, %v1298
      %v1300 = vpop.f32.mrf.mxu0
      %1301 = vmatprep.mubr.f32.mxu0 %v491
      %1302 = vmatmul.mubr.f32.gmra.mxu0 %v490
      %v1303 = vpop.f32.mrf.mxu0
      %v1304 = vadd.f32 %v1079, %v1303
      %v1305 = vpop.f32.mrf.mxu0
      %1306 = vmatprep.mubr.f32.mxu0 %v498
      %1307 = vmatmul.mubr.f32.gmra.mxu0 %v497
      %v1308 = vpop.f32.mrf.mxu0
      %v1309 = vadd.f32 %v1084, %v1308
      %v1310 = vpop.f32.mrf.mxu0
      %1311 = vmatprep.mubr.f32.mxu0 %v505
      %1312 = vmatmul.mubr.f32.gmra.mxu0 %v504
      %v1313 = vpop.f32.mrf.mxu0
      %v1314 = vadd.f32 %v1089, %v1313
      %v1315 = vpop.f32.mrf.mxu0
      %1316 = vmatprep.mubr.f32.mxu0 %v512
      %1317 = vmatmul.mubr.f32.gmra.mxu0 %v511
      %v1318 = vpop.f32.mrf.mxu0
      %v1319 = vadd.f32 %v1094, %v1318
      %v1320 = vpop.f32.mrf.mxu0
      %1321 = vmatprep.mubr.f32.mxu0 %v519
      %1322 = vmatmul.mubr.f32.gmra.mxu0 %v518
      %v1323 = vpop.f32.mrf.mxu0
      %v1324 = vadd.f32 %v1099, %v1323
      %v1325 = vpop.f32.mrf.mxu0
      %1326 = vmatprep.mubr.f32.mxu0 %v526
      %1327 = vmatmul.mubr.f32.gmra.mxu0 %v525
      %v1328 = vpop.f32.mrf.mxu0
      %v1329 = vadd.f32 %v1104, %v1328
      %v1330 = vpop.f32.mrf.mxu0
      %1331 = vmatprep.mubr.f32.mxu0 %v533
      %1332 = vmatmul.mubr.f32.gmra.mxu0 %v532
      %v1333 = vpop.f32.mrf.mxu0
      %v1334 = vadd.f32 %v1109, %v1333
      %v1335 = vpop.f32.mrf.mxu0
      %1336 = vmatprep.mubr.f32.mxu0 %v540
      %1337 = vmatmul.mubr.f32.gmra.mxu0 %v539
      %v1338 = vpop.f32.mrf.mxu0
      %v1339 = vadd.f32 %v1114, %v1338
      %v1340 = vpop.f32.mrf.mxu0
      %1341 = vmatprep.mubr.f32.mxu0 %v547
      %1342 = vmatmul.mubr.f32.gmra.mxu0 %v546
      %v1343 = vpop.f32.mrf.mxu0
      %v1344 = vadd.f32 %v1119, %v1343
      %v1345 = vpop.f32.mrf.mxu0
      %1346 = vmatprep.mubr.f32.mxu0 %v554
      %1347 = vmatmul.mubr.f32.gmra.mxu0 %v553
      %v1348 = vpop.f32.mrf.mxu0
      %v1349 = vadd.f32 %v1124, %v1348
      %v1350 = vpop.f32.mrf.mxu0
      %1351 = vmatprep.mubr.f32.mxu0 %v561
      %1352 = vmatmul.mubr.f32.gmra.mxu0 %v560
      %v1353 = vpop.f32.mrf.mxu0
      %v1354 = vadd.f32 %v1129, %v1353
      %v1355 = vpop.f32.mrf.mxu0
      %1356 = vdwg.mxu0
      %1357 = vmatprep.subr.mxu0 0.0
      %1358 = vmatpush1.msra.mxu0 %v674
      %1359 = vmatprep.subr.mxu0 0.0
      %1360 = vmatpush1.msra.mxu0 %v673
      %1361 = vmatprep.subr.mxu0 0.0
      %1362 = vmatpush1.msra.mxu0 %v672
      %1363 = vmatprep.subr.mxu0 0.0
      %1364 = vmatpush1.msra.mxu0 %v671
      %1365 = vmatprep.subr.mxu0 0.0
      %1366 = vmatpush1.msra.mxu0 %v670
      %1367 = vmatprep.subr.mxu0 0.0
      %1368 = vmatpush1.msra.mxu0 %v669
      %1369 = vmatprep.subr.mxu0 0.0
      %1370 = vmatpush1.msra.mxu0 %v668
      %1371 = vmatprep.subr.mxu0 0.0
      %1372 = vmatpush1.msra.mxu0 %v667
      %1373 = vmatprep.subr.mxu0 0.0
      %1374 = vmatpush1.msra.mxu0 %v666
      %1375 = vmatprep.subr.mxu0 0.0
      %1376 = vmatpush1.msra.mxu0 %v665
      %1377 = vmatprep.subr.mxu0 0.0
      %1378 = vmatpush1.msra.mxu0 %v664
      %1379 = vmatprep.subr.mxu0 0.0
      %1380 = vmatpush1.msra.mxu0 %v663
      %1381 = vmatprep.subr.mxu0 0.0
      %1382 = vmatpush1.msra.mxu0 %v662
      %1383 = vmatprep.subr.mxu0 0.0
      %1384 = vmatpush1.msra.mxu0 %v661
      %1385 = vmatprep.subr.mxu0 0.0
      %1386 = vmatpush1.msra.mxu0 %v660
      %1387 = vmatprep.subr.mxu0 0.0
      %1388 = vmatpush1.msra.mxu0 %v659
      %1389 = vmatprep.subr.mxu0 0.0
      %1390 = vmatpush2.msra.mxu0 0.0
      %1391 = vmatprep.subr.mxu0 0.0
      %1392 = vmatpush2.msra.mxu0 0.0
      %1393 = vmatprep.subr.mxu0 0.0
      %1394 = vmatpush2.msra.mxu0 0.0
      %1395 = vmatprep.subr.mxu0 0.0
      %1396 = vmatpush2.msra.mxu0 0.0
      %1397 = vmatprep.subr.mxu0 0.0
      %1398 = vmatpush2.msra.mxu0 0.0
      %1399 = vmatprep.subr.mxu0 0.0
      %1400 = vmatpush2.msra.mxu0 0.0
      %1401 = vmatprep.subr.mxu0 0.0
      %1402 = vmatpush2.msra.mxu0 0.0
      %1403 = vmatprep.subr.mxu0 0.0
      %1404 = vmatpush2.msra.mxu0 0.0
      %1405 = vmatprep.subr.mxu0 0.0
      %1406 = vmatpush2.msra.mxu0 0.0
      %1407 = vmatprep.subr.mxu0 0.0
      %1408 = vmatpush2.msra.mxu0 0.0
      %1409 = vmatprep.subr.mxu0 0.0
      %1410 = vmatpush2.msra.mxu0 0.0
      %1411 = vmatprep.subr.mxu0 0.0
      %1412 = vmatpush2.msra.mxu0 0.0
      %1413 = vmatprep.subr.mxu0 0.0
      %1414 = vmatpush2.msra.mxu0 0.0
      %1415 = vmatprep.subr.mxu0 0.0
      %1416 = vmatpush2.msra.mxu0 0.0
      %1417 = vmatprep.subr.mxu0 0.0
      %1418 = vmatpush2.msra.mxu0 0.0
      %1419 = vmatprep.subr.mxu0 0.0
      %1420 = vmatpush2.msra.mxu0 0.0
      %1421 = vmatprep.mubr.f32.mxu0 0.0
      %1422 = vmatmul.mubr.f32.gmra.mxu0 %v345
      %v1423 = vpop.f32.mrf.mxu0
      %v1424 = vadd.f32 %v1199, %v1423
      %v1425 = vpop.f32.mrf.mxu0
      %1426 = vmatprep.mubr.f32.mxu0 0.0
      %1427 = vmatmul.mubr.f32.gmra.mxu0 %v352
      %v1428 = vpop.f32.mrf.mxu0
      %v1429 = vadd.f32 %v1204, %v1428
      %v1430 = vpop.f32.mrf.mxu0
      %1431 = vmatprep.mubr.f32.mxu0 0.0
      %1432 = vmatmul.mubr.f32.gmra.mxu0 %v359
      %v1433 = vpop.f32.mrf.mxu0
      %v1434 = vadd.f32 %v1209, %v1433
      %v1435 = vpop.f32.mrf.mxu0
      %1436 = vmatprep.mubr.f32.mxu0 0.0
      %1437 = vmatmul.mubr.f32.gmra.mxu0 %v366
      %v1438 = vpop.f32.mrf.mxu0
      %v1439 = vadd.f32 %v1214, %v1438
      %v1440 = vpop.f32.mrf.mxu0
      %1441 = vmatprep.mubr.f32.mxu0 0.0
      %1442 = vmatmul.mubr.f32.gmra.mxu0 %v373
      %v1443 = vpop.f32.mrf.mxu0
      %v1444 = vadd.f32 %v1219, %v1443
      %v1445 = vpop.f32.mrf.mxu0
      %1446 = vmatprep.mubr.f32.mxu0 0.0
      %1447 = vmatmul.mubr.f32.gmra.mxu0 %v380
      %v1448 = vpop.f32.mrf.mxu0
      %v1449 = vadd.f32 %v1224, %v1448
      %v1450 = vpop.f32.mrf.mxu0
      %1451 = vmatprep.mubr.f32.mxu0 0.0
      %1452 = vmatmul.mubr.f32.gmra.mxu0 %v387
      %v1453 = vpop.f32.mrf.mxu0
      %v1454 = vadd.f32 %v1229, %v1453
      %v1455 = vpop.f32.mrf.mxu0
      %1456 = vmatprep.mubr.f32.mxu0 0.0
      %1457 = vmatmul.mubr.f32.gmra.mxu0 %v394
      %v1458 = vpop.f32.mrf.mxu0
      %v1459 = vadd.f32 %v1234, %v1458
      %v1460 = vpop.f32.mrf.mxu0
      %1461 = vmatprep.mubr.f32.mxu0 0.0
      %1462 = vmatmul.mubr.f32.gmra.mxu0 %v401
      %v1463 = vpop.f32.mrf.mxu0
      %v1464 = vadd.f32 %v1239, %v1463
      %v1465 = vpop.f32.mrf.mxu0
      %1466 = vmatprep.mubr.f32.mxu0 0.0
      %1467 = vmatmul.mubr.f32.gmra.mxu0 %v408
      %v1468 = vpop.f32.mrf.mxu0
      %v1469 = vadd.f32 %v1244, %v1468
      %v1470 = vpop.f32.mrf.mxu0
      %1471 = vmatprep.mubr.f32.mxu0 0.0
      %1472 = vmatmul.mubr.f32.gmra.mxu0 %v415
      %v1473 = vpop.f32.mrf.mxu0
      %v1474 = vadd.f32 %v1249, %v1473
      %v1475 = vpop.f32.mrf.mxu0
      %1476 = vmatprep.mubr.f32.mxu0 0.0
      %1477 = vmatmul.mubr.f32.gmra.mxu0 %v422
      %v1478 = vpop.f32.mrf.mxu0
      %v1479 = vadd.f32 %v1254, %v1478
      %v1480 = vpop.f32.mrf.mxu0
      %1481 = vmatprep.mubr.f32.mxu0 0.0
      %1482 = vmatmul.mubr.f32.gmra.mxu0 %v429
      %v1483 = vpop.f32.mrf.mxu0
      %v1484 = vadd.f32 %v1259, %v1483
      %v1485 = vpop.f32.mrf.mxu0
      %1486 = vmatprep.mubr.f32.mxu0 0.0
      %1487 = vmatmul.mubr.f32.gmra.mxu0 %v436
      %v1488 = vpop.f32.mrf.mxu0
      %v1489 = vadd.f32 %v1264, %v1488
      %v1490 = vpop.f32.mrf.mxu0
      %1491 = vmatprep.mubr.f32.mxu0 0.0
      %1492 = vmatmul.mubr.f32.gmra.mxu0 %v443
      %v1493 = vpop.f32.mrf.mxu0
      %v1494 = vadd.f32 %v1269, %v1493
      %v1495 = vpop.f32.mrf.mxu0
      %1496 = vmatprep.mubr.f32.mxu0 0.0
      %1497 = vmatmul.mubr.f32.gmra.mxu0 %v450
      %v1498 = vpop.f32.mrf.mxu0
      %v1499 = vadd.f32 %v1274, %v1498
      %v1500 = vpop.f32.mrf.mxu0
      %1501 = vmatprep.mubr.f32.mxu0 0.0
      %1502 = vmatmul.mubr.f32.gmra.mxu0 %v457
      %v1503 = vpop.f32.mrf.mxu0
      %v1504 = vadd.f32 %v1279, %v1503
      %v1505 = vpop.f32.mrf.mxu0
      %1506 = vmatprep.mubr.f32.mxu0 0.0
      %1507 = vmatmul.mubr.f32.gmra.mxu0 %v464
      %v1508 = vpop.f32.mrf.mxu0
      %v1509 = vadd.f32 %v1284, %v1508
      %v1510 = vpop.f32.mrf.mxu0
      %1511 = vmatprep.mubr.f32.mxu0 0.0
      %1512 = vmatmul.mubr.f32.gmra.mxu0 %v471
      %v1513 = vpop.f32.mrf.mxu0
      %v1514 = vadd.f32 %v1289, %v1513
      %v1515 = vpop.f32.mrf.mxu0
      %1516 = vmatprep.mubr.f32.mxu0 0.0
      %1517 = vmatmul.mubr.f32.gmra.mxu0 %v478
      %v1518 = vpop.f32.mrf.mxu0
      %v1519 = vadd.f32 %v1294, %v1518
      %v1520 = vpop.f32.mrf.mxu0
      %1521 = vmatprep.mubr.f32.mxu0 0.0
      %1522 = vmatmul.mubr.f32.gmra.mxu0 %v485
      %v1523 = vpop.f32.mrf.mxu0
      %v1524 = vadd.f32 %v1299, %v1523
      %v1525 = vpop.f32.mrf.mxu0
      %1526 = vmatprep.mubr.f32.mxu0 0.0
      %1527 = vmatmul.mubr.f32.gmra.mxu0 %v492
      %v1528 = vpop.f32.mrf.mxu0
      %v1529 = vadd.f32 %v1304, %v1528
      %v1530 = vpop.f32.mrf.mxu0
      %1531 = vmatprep.mubr.f32.mxu0 0.0
      %1532 = vmatmul.mubr.f32.gmra.mxu0 %v499
      %v1533 = vpop.f32.mrf.mxu0
      %v1534 = vadd.f32 %v1309, %v1533
      %v1535 = vpop.f32.mrf.mxu0
      %1536 = vmatprep.mubr.f32.mxu0 0.0
      %1537 = vmatmul.mubr.f32.gmra.mxu0 %v506
      %v1538 = vpop.f32.mrf.mxu0
      %v1539 = vadd.f32 %v1314, %v1538
      %v1540 = vpop.f32.mrf.mxu0
      %1541 = vmatprep.mubr.f32.mxu0 0.0
      %1542 = vmatmul.mubr.f32.gmra.mxu0 %v513
      %v1543 = vpop.f32.mrf.mxu0
      %v1544 = vadd.f32 %v1319, %v1543
      %v1545 = vpop.f32.mrf.mxu0
      %1546 = vmatprep.mubr.f32.mxu0 0.0
      %1547 = vmatmul.mubr.f32.gmra.mxu0 %v520
      %v1548 = vpop.f32.mrf.mxu0
      %v1549 = vadd.f32 %v1324, %v1548
      %v1550 = vpop.f32.mrf.mxu0
      %1551 = vmatprep.mubr.f32.mxu0 0.0
      %1552 = vmatmul.mubr.f32.gmra.mxu0 %v527
      %v1553 = vpop.f32.mrf.mxu0
      %v1554 = vadd.f32 %v1329, %v1553
      %v1555 = vpop.f32.mrf.mxu0
      %1556 = vmatprep.mubr.f32.mxu0 0.0
      %1557 = vmatmul.mubr.f32.gmra.mxu0 %v534
      %v1558 = vpop.f32.mrf.mxu0
      %v1559 = vadd.f32 %v1334, %v1558
      %v1560 = vpop.f32.mrf.mxu0
      %1561 = vmatprep.mubr.f32.mxu0 0.0
      %1562 = vmatmul.mubr.f32.gmra.mxu0 %v541
      %v1563 = vpop.f32.mrf.mxu0
      %v1564 = vadd.f32 %v1339, %v1563
      %v1565 = vpop.f32.mrf.mxu0
      %1566 = vmatprep.mubr.f32.mxu0 0.0
      %1567 = vmatmul.mubr.f32.gmra.mxu0 %v548
      %v1568 = vpop.f32.mrf.mxu0
      %v1569 = vadd.f32 %v1344, %v1568
      %v1570 = vpop.f32.mrf.mxu0
      %1571 = vmatprep.mubr.f32.mxu0 0.0
      %1572 = vmatmul.mubr.f32.gmra.mxu0 %v555
      %v1573 = vpop.f32.mrf.mxu0
      %v1574 = vadd.f32 %v1349, %v1573
      %v1575 = vpop.f32.mrf.mxu0
      %1576 = vmatprep.mubr.f32.mxu0 0.0
      %1577 = vmatmul.mubr.f32.gmra.mxu0 %v562
      %v1578 = vpop.f32.mrf.mxu0
      %v1579 = vadd.f32 %v1354, %v1578
      %v1580 = vpop.f32.mrf.mxu0
      %1581 = vdwg.mxu0
      %v1582 = vmax.f32 %v1424, 0.0
      %v1583 = vmax.f32 %v1429, 0.0
      %v1584 = vmax.f32 %v1434, 0.0
      %v1585 = vmax.f32 %v1439, 0.0
      %v1586 = vmax.f32 %v1444, 0.0
      %v1587 = vmax.f32 %v1449, 0.0
      %v1588 = vmax.f32 %v1454, 0.0
      %v1589 = vmax.f32 %v1459, 0.0
      %v1590 = vmax.f32 %v1464, 0.0
      %v1591 = vmax.f32 %v1469, 0.0
      %v1592 = vmax.f32 %v1474, 0.0
      %v1593 = vmax.f32 %v1479, 0.0
      %v1594 = vmax.f32 %v1484, 0.0
      %v1595 = vmax.f32 %v1489, 0.0
      %v1596 = vmax.f32 %v1494, 0.0
      %v1597 = vmax.f32 %v1499, 0.0
      %v1598 = vmax.f32 %v1504, 0.0
      %v1599 = vmax.f32 %v1509, 0.0
      %v1600 = vmax.f32 %v1514, 0.0
      %v1601 = vmax.f32 %v1519, 0.0
      %v1602 = vmax.f32 %v1524, 0.0
      %v1603 = vmax.f32 %v1529, 0.0
      %v1604 = vmax.f32 %v1534, 0.0
      %v1605 = vmax.f32 %v1539, 0.0
      %v1606 = vmax.f32 %v1544, 0.0
      %v1607 = vmax.f32 %v1549, 0.0
      %v1608 = vmax.f32 %v1554, 0.0
      %v1609 = vmax.f32 %v1559, 0.0
      %v1610 = vmax.f32 %v1564, 0.0
      %v1611 = vmax.f32 %v1569, 0.0
      %v1612 = vmax.f32 %v1574, 0.0
      %v1613 = vmax.f32 %v1579, 0.0
      %v1614 = vld [vmem:[%s3] sm:$0xff]
      %v1615 = vld [vmem:[%s3 + $0x8] sm:$0xff]
      %v1616 = vld [vmem:[%s3 + $0x10] sm:$0xff]
      %v1617 = vld [vmem:[%s3 + $0x18] sm:$0xff]
      %v1618 = vld [vmem:[%s3 + $0x20] sm:$0xff]
      %v1619 = vld [vmem:[%s3 + $0x28] sm:$0xff]
      %v1620 = vld [vmem:[%s3 + $0x30] sm:$0xff]
      %v1621 = vld [vmem:[%s3 + $0x38] sm:$0xff]
      %v1622 = vld [vmem:[%s4] sm:$0x1]
      %v1624 = vlaneseq
      %v1625 = vshrl.u32 %v1624, 7
      %v1626 = vsub.s32 0, %v1625
      %v1627 = vrot.slane %v1622, %v1626
      %vm1629 = vcmask 523264
      %v1631 = vsel %vm1629, %v1582, 0
      %v1634 = vsel %vm1629, %v1583, 0
      %v1637 = vsel %vm1629, %v1584, 0
      %v1640 = vsel %vm1629, %v1585, 0
      %v1643 = vsel %vm1629, %v1586, 0
      %v1646 = vsel %vm1629, %v1587, 0
      %v1649 = vsel %vm1629, %v1588, 0
      %v1652 = vsel %vm1629, %v1589, 0
      %v1655 = vsel %vm1629, %v1590, 0
      %v1658 = vsel %vm1629, %v1591, 0
      %v1661 = vsel %vm1629, %v1592, 0
      %v1664 = vsel %vm1629, %v1593, 0
      %v1667 = vsel %vm1629, %v1594, 0
      %v1670 = vsel %vm1629, %v1595, 0
      %v1673 = vsel %vm1629, %v1596, 0
      %v1676 = vsel %vm1629, %v1597, 0
      %v1679 = vsel %vm1629, %v1598, 0
      %v1682 = vsel %vm1629, %v1599, 0
      %v1685 = vsel %vm1629, %v1600, 0
      %v1688 = vsel %vm1629, %v1601, 0
      %v1691 = vsel %vm1629, %v1602, 0
      %v1694 = vsel %vm1629, %v1603, 0
      %v1697 = vsel %vm1629, %v1604, 0
      %v1700 = vsel %vm1629, %v1605, 0
      %v1703 = vsel %vm1629, %v1606, 0
      %v1706 = vsel %vm1629, %v1607, 0
      %v1709 = vsel %vm1629, %v1608, 0
      %v1712 = vsel %vm1629, %v1609, 0
      %v1715 = vsel %vm1629, %v1610, 0
      %v1718 = vsel %vm1629, %v1611, 0
      %v1721 = vsel %vm1629, %v1612, 0
      %v1724 = vsel %vm1629, %v1613, 0
      %1726 = vmatprep.subr.mxu0 0.0
      %1727 = vmatpush1.msra.mxu0 0.0
      %1728 = vmatprep.subr.mxu0 0.0
      %1729 = vmatpush1.msra.mxu0 0.0
      %1730 = vmatprep.subr.mxu0 0.0
      %1731 = vmatpush1.msra.mxu0 0.0
      %1732 = vmatprep.subr.mxu0 0.0
      %1733 = vmatpush1.msra.mxu0 0.0
      %1734 = vmatprep.subr.mxu0 0.0
      %1735 = vmatpush1.msra.mxu0 0.0
      %1736 = vmatprep.subr.mxu0 0.0
      %1737 = vmatpush1.msra.mxu0 0.0
      %1738 = vmatprep.subr.mxu0 0.0
      %1739 = vmatpush1.msra.mxu0 0.0
      %1740 = vmatprep.subr.mxu0 0.0
      %1741 = vmatpush1.msra.mxu0 0.0
      %1742 = vmatprep.subr.mxu0 0.0
      %1743 = vmatpush1.msra.mxu0 %v1621
      %1744 = vmatprep.subr.mxu0 0.0
      %1745 = vmatpush1.msra.mxu0 %v1620
      %1746 = vmatprep.subr.mxu0 0.0
      %1747 = vmatpush1.msra.mxu0 %v1619
      %1748 = vmatprep.subr.mxu0 0.0
      %1749 = vmatpush1.msra.mxu0 %v1618
      %1750 = vmatprep.subr.mxu0 0.0
      %1751 = vmatpush1.msra.mxu0 %v1617
      %1752 = vmatprep.subr.mxu0 0.0
      %1753 = vmatpush1.msra.mxu0 %v1616
      %1754 = vmatprep.subr.mxu0 0.0
      %1755 = vmatpush1.msra.mxu0 %v1615
      %1756 = vmatprep.subr.mxu0 0.0
      %1757 = vmatpush1.msra.mxu0 %v1614
      %1758 = vmatprep.subr.mxu0 0.0
      %1759 = vmatpush2.msra.mxu0 0.0
      %1760 = vmatprep.subr.mxu0 0.0
      %1761 = vmatpush2.msra.mxu0 0.0
      %1762 = vmatprep.subr.mxu0 0.0
      %1763 = vmatpush2.msra.mxu0 0.0
      %1764 = vmatprep.subr.mxu0 0.0
      %1765 = vmatpush2.msra.mxu0 0.0
      %1766 = vmatprep.subr.mxu0 0.0
      %1767 = vmatpush2.msra.mxu0 0.0
      %1768 = vmatprep.subr.mxu0 0.0
      %1769 = vmatpush2.msra.mxu0 0.0
      %1770 = vmatprep.subr.mxu0 0.0
      %1771 = vmatpush2.msra.mxu0 0.0
      %1772 = vmatprep.subr.mxu0 0.0
      %1773 = vmatpush2.msra.mxu0 0.0
      %1774 = vmatprep.subr.mxu0 0.0
      %1775 = vmatpush2.msra.mxu0 0.0
      %1776 = vmatprep.subr.mxu0 0.0
      %1777 = vmatpush2.msra.mxu0 0.0
      %1778 = vmatprep.subr.mxu0 0.0
      %1779 = vmatpush2.msra.mxu0 0.0
      %1780 = vmatprep.subr.mxu0 0.0
      %1781 = vmatpush2.msra.mxu0 0.0
      %1782 = vmatprep.subr.mxu0 0.0
      %1783 = vmatpush2.msra.mxu0 0.0
      %1784 = vmatprep.subr.mxu0 0.0
      %1785 = vmatpush2.msra.mxu0 0.0
      %1786 = vmatprep.subr.mxu0 0.0
      %1787 = vmatpush2.msra.mxu0 0.0
      %1788 = vmatprep.subr.mxu0 0.0
      %1789 = vmatpush2.msra.mxu0 0.0
      %1790 = vmatprep.mubr.f32.mxu0 0.0
      %1791 = vmatmul.mubr.f32.gmra.mxu0 %v1631
      %v1792 = vpop.f32.mrf.mxu0
      %v1793 = vadd.f32 %v1627, %v1792
      %v1794 = vpop.f32.mrf.mxu0
      %1795 = vmatprep.mubr.f32.mxu0 0.0
      %1796 = vmatmul.mubr.f32.gmra.mxu0 %v1634
      %v1797 = vpop.f32.mrf.mxu0
      %v1798 = vadd.f32 %v1627, %v1797
      %v1799 = vpop.f32.mrf.mxu0
      %1800 = vmatprep.mubr.f32.mxu0 0.0
      %1801 = vmatmul.mubr.f32.gmra.mxu0 %v1637
      %v1802 = vpop.f32.mrf.mxu0
      %v1803 = vadd.f32 %v1627, %v1802
      %v1804 = vpop.f32.mrf.mxu0
      %1805 = vmatprep.mubr.f32.mxu0 0.0
      %1806 = vmatmul.mubr.f32.gmra.mxu0 %v1640
      %v1807 = vpop.f32.mrf.mxu0
      %v1808 = vadd.f32 %v1627, %v1807
      %v1809 = vpop.f32.mrf.mxu0
      %1810 = vmatprep.mubr.f32.mxu0 0.0
      %1811 = vmatmul.mubr.f32.gmra.mxu0 %v1643
      %v1812 = vpop.f32.mrf.mxu0
      %v1813 = vadd.f32 %v1627, %v1812
      %v1814 = vpop.f32.mrf.mxu0
      %1815 = vmatprep.mubr.f32.mxu0 0.0
      %1816 = vmatmul.mubr.f32.gmra.mxu0 %v1646
      %v1817 = vpop.f32.mrf.mxu0
      %v1818 = vadd.f32 %v1627, %v1817
      %v1819 = vpop.f32.mrf.mxu0
      %1820 = vmatprep.mubr.f32.mxu0 0.0
      %1821 = vmatmul.mubr.f32.gmra.mxu0 %v1649
      %v1822 = vpop.f32.mrf.mxu0
      %v1823 = vadd.f32 %v1627, %v1822
      %v1824 = vpop.f32.mrf.mxu0
      %1825 = vmatprep.mubr.f32.mxu0 0.0
      %1826 = vmatmul.mubr.f32.gmra.mxu0 %v1652
      %v1827 = vpop.f32.mrf.mxu0
      %v1828 = vadd.f32 %v1627, %v1827
      %v1829 = vpop.f32.mrf.mxu0
      %1830 = vmatprep.mubr.f32.mxu0 0.0
      %1831 = vmatmul.mubr.f32.gmra.mxu0 %v1655
      %v1832 = vpop.f32.mrf.mxu0
      %v1833 = vadd.f32 %v1627, %v1832
      %v1834 = vpop.f32.mrf.mxu0
      %1835 = vmatprep.mubr.f32.mxu0 0.0
      %1836 = vmatmul.mubr.f32.gmra.mxu0 %v1658
      %v1837 = vpop.f32.mrf.mxu0
      %v1838 = vadd.f32 %v1627, %v1837
      %v1839 = vpop.f32.mrf.mxu0
      %1840 = vmatprep.mubr.f32.mxu0 0.0
      %1841 = vmatmul.mubr.f32.gmra.mxu0 %v1661
      %v1842 = vpop.f32.mrf.mxu0
      %v1843 = vadd.f32 %v1627, %v1842
      %v1844 = vpop.f32.mrf.mxu0
      %1845 = vmatprep.mubr.f32.mxu0 0.0
      %1846 = vmatmul.mubr.f32.gmra.mxu0 %v1664
      %v1847 = vpop.f32.mrf.mxu0
      %v1848 = vadd.f32 %v1627, %v1847
      %v1849 = vpop.f32.mrf.mxu0
      %1850 = vmatprep.mubr.f32.mxu0 0.0
      %1851 = vmatmul.mubr.f32.gmra.mxu0 %v1667
      %v1852 = vpop.f32.mrf.mxu0
      %v1853 = vadd.f32 %v1627, %v1852
      %v1854 = vpop.f32.mrf.mxu0
      %1855 = vmatprep.mubr.f32.mxu0 0.0
      %1856 = vmatmul.mubr.f32.gmra.mxu0 %v1670
      %v1857 = vpop.f32.mrf.mxu0
      %v1858 = vadd.f32 %v1627, %v1857
      %v1859 = vpop.f32.mrf.mxu0
      %1860 = vmatprep.mubr.f32.mxu0 0.0
      %1861 = vmatmul.mubr.f32.gmra.mxu0 %v1673
      %v1862 = vpop.f32.mrf.mxu0
      %v1863 = vadd.f32 %v1627, %v1862
      %v1864 = vpop.f32.mrf.mxu0
      %1865 = vmatprep.mubr.f32.mxu0 0.0
      %1866 = vmatmul.mubr.f32.gmra.mxu0 %v1676
      %v1867 = vpop.f32.mrf.mxu0
      %v1868 = vadd.f32 %v1627, %v1867
      %v1869 = vpop.f32.mrf.mxu0
      %1870 = vmatprep.mubr.f32.mxu0 0.0
      %1871 = vmatmul.mubr.f32.gmra.mxu0 %v1679
      %v1872 = vpop.f32.mrf.mxu0
      %v1873 = vadd.f32 %v1627, %v1872
      %v1874 = vpop.f32.mrf.mxu0
      %1875 = vmatprep.mubr.f32.mxu0 0.0
      %1876 = vmatmul.mubr.f32.gmra.mxu0 %v1682
      %v1877 = vpop.f32.mrf.mxu0
      %v1878 = vadd.f32 %v1627, %v1877
      %v1879 = vpop.f32.mrf.mxu0
      %1880 = vmatprep.mubr.f32.mxu0 0.0
      %1881 = vmatmul.mubr.f32.gmra.mxu0 %v1685
      %v1882 = vpop.f32.mrf.mxu0
      %v1883 = vadd.f32 %v1627, %v1882
      %v1884 = vpop.f32.mrf.mxu0
      %1885 = vmatprep.mubr.f32.mxu0 0.0
      %1886 = vmatmul.mubr.f32.gmra.mxu0 %v1688
      %v1887 = vpop.f32.mrf.mxu0
      %v1888 = vadd.f32 %v1627, %v1887
      %v1889 = vpop.f32.mrf.mxu0
      %1890 = vmatprep.mubr.f32.mxu0 0.0
      %1891 = vmatmul.mubr.f32.gmra.mxu0 %v1691
      %v1892 = vpop.f32.mrf.mxu0
      %v1893 = vadd.f32 %v1627, %v1892
      %v1894 = vpop.f32.mrf.mxu0
      %1895 = vmatprep.mubr.f32.mxu0 0.0
      %1896 = vmatmul.mubr.f32.gmra.mxu0 %v1694
      %v1897 = vpop.f32.mrf.mxu0
      %v1898 = vadd.f32 %v1627, %v1897
      %v1899 = vpop.f32.mrf.mxu0
      %1900 = vmatprep.mubr.f32.mxu0 0.0
      %1901 = vmatmul.mubr.f32.gmra.mxu0 %v1697
      %v1902 = vpop.f32.mrf.mxu0
      %v1903 = vadd.f32 %v1627, %v1902
      %v1904 = vpop.f32.mrf.mxu0
      %1905 = vmatprep.mubr.f32.mxu0 0.0
      %1906 = vmatmul.mubr.f32.gmra.mxu0 %v1700
      %v1907 = vpop.f32.mrf.mxu0
      %v1908 = vadd.f32 %v1627, %v1907
      %v1909 = vpop.f32.mrf.mxu0
      %1910 = vmatprep.mubr.f32.mxu0 0.0
      %1911 = vmatmul.mubr.f32.gmra.mxu0 %v1703
      %v1912 = vpop.f32.mrf.mxu0
      %v1913 = vadd.f32 %v1627, %v1912
      %v1914 = vpop.f32.mrf.mxu0
      %1915 = vmatprep.mubr.f32.mxu0 0.0
      %1916 = vmatmul.mubr.f32.gmra.mxu0 %v1706
      %v1917 = vpop.f32.mrf.mxu0
      %v1918 = vadd.f32 %v1627, %v1917
      %v1919 = vpop.f32.mrf.mxu0
      %1920 = vmatprep.mubr.f32.mxu0 0.0
      %1921 = vmatmul.mubr.f32.gmra.mxu0 %v1709
      %v1922 = vpop.f32.mrf.mxu0
      %v1923 = vadd.f32 %v1627, %v1922
      %v1924 = vpop.f32.mrf.mxu0
      %1925 = vmatprep.mubr.f32.mxu0 0.0
      %1926 = vmatmul.mubr.f32.gmra.mxu0 %v1712
      %v1927 = vpop.f32.mrf.mxu0
      %v1928 = vadd.f32 %v1627, %v1927
      %v1929 = vpop.f32.mrf.mxu0
      %1930 = vmatprep.mubr.f32.mxu0 0.0
      %1931 = vmatmul.mubr.f32.gmra.mxu0 %v1715
      %v1932 = vpop.f32.mrf.mxu0
      %v1933 = vadd.f32 %v1627, %v1932
      %v1934 = vpop.f32.mrf.mxu0
      %1935 = vmatprep.mubr.f32.mxu0 0.0
      %1936 = vmatmul.mubr.f32.gmra.mxu0 %v1718
      %v1937 = vpop.f32.mrf.mxu0
      %v1938 = vadd.f32 %v1627, %v1937
      %v1939 = vpop.f32.mrf.mxu0
      %1940 = vmatprep.mubr.f32.mxu0 0.0
      %1941 = vmatmul.mubr.f32.gmra.mxu0 %v1721
      %v1942 = vpop.f32.mrf.mxu0
      %v1943 = vadd.f32 %v1627, %v1942
      %v1944 = vpop.f32.mrf.mxu0
      %1945 = vmatprep.mubr.f32.mxu0 0.0
      %1946 = vmatmul.mubr.f32.gmra.mxu0 %v1724
      %v1947 = vpop.f32.mrf.mxu0
      %v1948 = vadd.f32 %v1627, %v1947
      %v1949 = vpop.f32.mrf.mxu0
      %1950 = vdwg.mxu0
      %v1951 = vmax.f32 %v1793, 0.0
      %v1952 = vmax.f32 %v1798, 0.0
      %v1953 = vmax.f32 %v1803, 0.0
      %v1954 = vmax.f32 %v1808, 0.0
      %v1955 = vmax.f32 %v1813, 0.0
      %v1956 = vmax.f32 %v1818, 0.0
      %v1957 = vmax.f32 %v1823, 0.0
      %v1958 = vmax.f32 %v1828, 0.0
      %v1959 = vmax.f32 %v1833, 0.0
      %v1960 = vmax.f32 %v1838, 0.0
      %v1961 = vmax.f32 %v1843, 0.0
      %v1962 = vmax.f32 %v1848, 0.0
      %v1963 = vmax.f32 %v1853, 0.0
      %v1964 = vmax.f32 %v1858, 0.0
      %v1965 = vmax.f32 %v1863, 0.0
      %v1966 = vmax.f32 %v1868, 0.0
      %v1967 = vmax.f32 %v1873, 0.0
      %v1968 = vmax.f32 %v1878, 0.0
      %v1969 = vmax.f32 %v1883, 0.0
      %v1970 = vmax.f32 %v1888, 0.0
      %v1971 = vmax.f32 %v1893, 0.0
      %v1972 = vmax.f32 %v1898, 0.0
      %v1973 = vmax.f32 %v1903, 0.0
      %v1974 = vmax.f32 %v1908, 0.0
      %v1975 = vmax.f32 %v1913, 0.0
      %v1976 = vmax.f32 %v1918, 0.0
      %v1977 = vmax.f32 %v1923, 0.0
      %v1978 = vmax.f32 %v1928, 0.0
      %v1979 = vmax.f32 %v1933, 0.0
      %v1980 = vmax.f32 %v1938, 0.0
      %v1981 = vmax.f32 %v1943, 0.0
      %v1982 = vmax.f32 %v1948, 0.0
      %v1983 = vld [vmem:[%s5] sm:$0xff]
      %v1984 = vld [vmem:[%s5 + $0x8] sm:$0xff]
      %v1985 = vld [vmem:[%s5 + $0x10] sm:$0xff]
      %v1986 = vld [vmem:[%s5 + $0x18] sm:$0xff]
      %v1987 = vld [vmem:[%s5 + $0x20] sm:$0xff]
      %v1988 = vld [vmem:[%s5 + $0x28] sm:$0xff]
      %v1989 = vld [vmem:[%s5 + $0x30] sm:$0xff]
      %v1990 = vld [vmem:[%s5 + $0x38] sm:$0xff]
      %v1991 = vld [vmem:[%s6] sm:$0x1]
      %v1993 = vlaneseq
      %v1994 = vshrl.u32 %v1993, 7
      %v1995 = vsub.s32 0, %v1994
      %v1996 = vrot.slane %v1991, %v1995
      %v1999 = vsel %vm1629, %v1951, 0
      %v2002 = vsel %vm1629, %v1952, 0
      %v2005 = vsel %vm1629, %v1953, 0
      %v2008 = vsel %vm1629, %v1954, 0
      %v2011 = vsel %vm1629, %v1955, 0
      %v2014 = vsel %vm1629, %v1956, 0
      %v2017 = vsel %vm1629, %v1957, 0
      %v2020 = vsel %vm1629, %v1958, 0
      %v2023 = vsel %vm1629, %v1959, 0
      %v2026 = vsel %vm1629, %v1960, 0
      %v2029 = vsel %vm1629, %v1961, 0
      %v2032 = vsel %vm1629, %v1962, 0
      %v2035 = vsel %vm1629, %v1963, 0
      %v2038 = vsel %vm1629, %v1964, 0
      %v2041 = vsel %vm1629, %v1965, 0
      %v2044 = vsel %vm1629, %v1966, 0
      %v2047 = vsel %vm1629, %v1967, 0
      %v2050 = vsel %vm1629, %v1968, 0
      %v2053 = vsel %vm1629, %v1969, 0
      %v2056 = vsel %vm1629, %v1970, 0
      %v2059 = vsel %vm1629, %v1971, 0
      %v2062 = vsel %vm1629, %v1972, 0
      %v2065 = vsel %vm1629, %v1973, 0
      %v2068 = vsel %vm1629, %v1974, 0
      %v2071 = vsel %vm1629, %v1975, 0
      %v2074 = vsel %vm1629, %v1976, 0
      %v2077 = vsel %vm1629, %v1977, 0
      %v2080 = vsel %vm1629, %v1978, 0
      %v2083 = vsel %vm1629, %v1979, 0
      %v2086 = vsel %vm1629, %v1980, 0
      %v2089 = vsel %vm1629, %v1981, 0
      %v2092 = vsel %vm1629, %v1982, 0
      %2094 = vmatprep.subr.mxu0 0.0
      %2095 = vmatpush1.msra.mxu0 0.0
      %2096 = vmatprep.subr.mxu0 0.0
      %2097 = vmatpush1.msra.mxu0 0.0
      %2098 = vmatprep.subr.mxu0 0.0
      %2099 = vmatpush1.msra.mxu0 0.0
      %2100 = vmatprep.subr.mxu0 0.0
      %2101 = vmatpush1.msra.mxu0 0.0
      %2102 = vmatprep.subr.mxu0 0.0
      %2103 = vmatpush1.msra.mxu0 0.0
      %2104 = vmatprep.subr.mxu0 0.0
      %2105 = vmatpush1.msra.mxu0 0.0
      %2106 = vmatprep.subr.mxu0 0.0
      %2107 = vmatpush1.msra.mxu0 0.0
      %2108 = vmatprep.subr.mxu0 0.0
      %2109 = vmatpush1.msra.mxu0 0.0
      %2110 = vmatprep.subr.mxu0 0.0
      %2111 = vmatpush1.msra.mxu0 %v1990
      %2112 = vmatprep.subr.mxu0 0.0
      %2113 = vmatpush1.msra.mxu0 %v1989
      %2114 = vmatprep.subr.mxu0 0.0
      %2115 = vmatpush1.msra.mxu0 %v1988
      %2116 = vmatprep.subr.mxu0 0.0
      %2117 = vmatpush1.msra.mxu0 %v1987
      %2118 = vmatprep.subr.mxu0 0.0
      %2119 = vmatpush1.msra.mxu0 %v1986
      %2120 = vmatprep.subr.mxu0 0.0
      %2121 = vmatpush1.msra.mxu0 %v1985
      %2122 = vmatprep.subr.mxu0 0.0
      %2123 = vmatpush1.msra.mxu0 %v1984
      %2124 = vmatprep.subr.mxu0 0.0
      %2125 = vmatpush1.msra.mxu0 %v1983
      %2126 = vmatprep.subr.mxu0 0.0
      %2127 = vmatpush2.msra.mxu0 0.0
      %2128 = vmatprep.subr.mxu0 0.0
      %2129 = vmatpush2.msra.mxu0 0.0
      %2130 = vmatprep.subr.mxu0 0.0
      %2131 = vmatpush2.msra.mxu0 0.0
      %2132 = vmatprep.subr.mxu0 0.0
      %2133 = vmatpush2.msra.mxu0 0.0
      %2134 = vmatprep.subr.mxu0 0.0
      %2135 = vmatpush2.msra.mxu0 0.0
      %2136 = vmatprep.subr.mxu0 0.0
      %2137 = vmatpush2.msra.mxu0 0.0
      %2138 = vmatprep.subr.mxu0 0.0
      %2139 = vmatpush2.msra.mxu0 0.0
      %2140 = vmatprep.subr.mxu0 0.0
      %2141 = vmatpush2.msra.mxu0 0.0
      %2142 = vmatprep.subr.mxu0 0.0
      %2143 = vmatpush2.msra.mxu0 0.0
      %2144 = vmatprep.subr.mxu0 0.0
      %2145 = vmatpush2.msra.mxu0 0.0
      %2146 = vmatprep.subr.mxu0 0.0
      %2147 = vmatpush2.msra.mxu0 0.0
      %2148 = vmatprep.subr.mxu0 0.0
      %2149 = vmatpush2.msra.mxu0 0.0
      %2150 = vmatprep.subr.mxu0 0.0
      %2151 = vmatpush2.msra.mxu0 0.0
      %2152 = vmatprep.subr.mxu0 0.0
      %2153 = vmatpush2.msra.mxu0 0.0
      %2154 = vmatprep.subr.mxu0 0.0
      %2155 = vmatpush2.msra.mxu0 0.0
      %2156 = vmatprep.subr.mxu0 0.0
      %2157 = vmatpush2.msra.mxu0 0.0
      %2158 = vmatprep.mubr.f32.mxu0 0.0
      %2159 = vmatmul.mubr.f32.gmra.mxu0 %v1999
      %v2160 = vpop.f32.mrf.mxu0
      %v2161 = vadd.f32 %v1996, %v2160
      %v2162 = vpop.f32.mrf.mxu0
      %2163 = vmatprep.mubr.f32.mxu0 0.0
      %2164 = vmatmul.mubr.f32.gmra.mxu0 %v2002
      %v2165 = vpop.f32.mrf.mxu0
      %v2166 = vadd.f32 %v1996, %v2165
      %v2167 = vpop.f32.mrf.mxu0
      %2168 = vmatprep.mubr.f32.mxu0 0.0
      %2169 = vmatmul.mubr.f32.gmra.mxu0 %v2005
      %v2170 = vpop.f32.mrf.mxu0
      %v2171 = vadd.f32 %v1996, %v2170
      %v2172 = vpop.f32.mrf.mxu0
      %2173 = vmatprep.mubr.f32.mxu0 0.0
      %2174 = vmatmul.mubr.f32.gmra.mxu0 %v2008
      %v2175 = vpop.f32.mrf.mxu0
      %v2176 = vadd.f32 %v1996, %v2175
      %v2177 = vpop.f32.mrf.mxu0
      %2178 = vmatprep.mubr.f32.mxu0 0.0
      %2179 = vmatmul.mubr.f32.gmra.mxu0 %v2011
      %v2180 = vpop.f32.mrf.mxu0
      %v2181 = vadd.f32 %v1996, %v2180
      %v2182 = vpop.f32.mrf.mxu0
      %2183 = vmatprep.mubr.f32.mxu0 0.0
      %2184 = vmatmul.mubr.f32.gmra.mxu0 %v2014
      %v2185 = vpop.f32.mrf.mxu0
      %v2186 = vadd.f32 %v1996, %v2185
      %v2187 = vpop.f32.mrf.mxu0
      %2188 = vmatprep.mubr.f32.mxu0 0.0
      %2189 = vmatmul.mubr.f32.gmra.mxu0 %v2017
      %v2190 = vpop.f32.mrf.mxu0
      %v2191 = vadd.f32 %v1996, %v2190
      %v2192 = vpop.f32.mrf.mxu0
      %2193 = vmatprep.mubr.f32.mxu0 0.0
      %2194 = vmatmul.mubr.f32.gmra.mxu0 %v2020
      %v2195 = vpop.f32.mrf.mxu0
      %v2196 = vadd.f32 %v1996, %v2195
      %v2197 = vpop.f32.mrf.mxu0
      %2198 = vmatprep.mubr.f32.mxu0 0.0
      %2199 = vmatmul.mubr.f32.gmra.mxu0 %v2023
      %v2200 = vpop.f32.mrf.mxu0
      %v2201 = vadd.f32 %v1996, %v2200
      %v2202 = vpop.f32.mrf.mxu0
      %2203 = vmatprep.mubr.f32.mxu0 0.0
      %2204 = vmatmul.mubr.f32.gmra.mxu0 %v2026
      %v2205 = vpop.f32.mrf.mxu0
      %v2206 = vadd.f32 %v1996, %v2205
      %v2207 = vpop.f32.mrf.mxu0
      %2208 = vmatprep.mubr.f32.mxu0 0.0
      %2209 = vmatmul.mubr.f32.gmra.mxu0 %v2029
      %v2210 = vpop.f32.mrf.mxu0
      %v2211 = vadd.f32 %v1996, %v2210
      %v2212 = vpop.f32.mrf.mxu0
      %2213 = vmatprep.mubr.f32.mxu0 0.0
      %2214 = vmatmul.mubr.f32.gmra.mxu0 %v2032
      %v2215 = vpop.f32.mrf.mxu0
      %v2216 = vadd.f32 %v1996, %v2215
      %v2217 = vpop.f32.mrf.mxu0
      %2218 = vmatprep.mubr.f32.mxu0 0.0
      %2219 = vmatmul.mubr.f32.gmra.mxu0 %v2035
      %v2220 = vpop.f32.mrf.mxu0
      %v2221 = vadd.f32 %v1996, %v2220
      %v2222 = vpop.f32.mrf.mxu0
      %2223 = vmatprep.mubr.f32.mxu0 0.0
      %2224 = vmatmul.mubr.f32.gmra.mxu0 %v2038
      %v2225 = vpop.f32.mrf.mxu0
      %v2226 = vadd.f32 %v1996, %v2225
      %v2227 = vpop.f32.mrf.mxu0
      %2228 = vmatprep.mubr.f32.mxu0 0.0
      %2229 = vmatmul.mubr.f32.gmra.mxu0 %v2041
      %v2230 = vpop.f32.mrf.mxu0
      %v2231 = vadd.f32 %v1996, %v2230
      %v2232 = vpop.f32.mrf.mxu0
      %2233 = vmatprep.mubr.f32.mxu0 0.0
      %2234 = vmatmul.mubr.f32.gmra.mxu0 %v2044
      %v2235 = vpop.f32.mrf.mxu0
      %v2236 = vadd.f32 %v1996, %v2235
      %v2237 = vpop.f32.mrf.mxu0
      %2238 = vmatprep.mubr.f32.mxu0 0.0
      %2239 = vmatmul.mubr.f32.gmra.mxu0 %v2047
      %v2240 = vpop.f32.mrf.mxu0
      %v2241 = vadd.f32 %v1996, %v2240
      %v2242 = vpop.f32.mrf.mxu0
      %2243 = vmatprep.mubr.f32.mxu0 0.0
      %2244 = vmatmul.mubr.f32.gmra.mxu0 %v2050
      %v2245 = vpop.f32.mrf.mxu0
      %v2246 = vadd.f32 %v1996, %v2245
      %v2247 = vpop.f32.mrf.mxu0
      %2248 = vmatprep.mubr.f32.mxu0 0.0
      %2249 = vmatmul.mubr.f32.gmra.mxu0 %v2053
      %v2250 = vpop.f32.mrf.mxu0
      %v2251 = vadd.f32 %v1996, %v2250
      %v2252 = vpop.f32.mrf.mxu0
      %2253 = vmatprep.mubr.f32.mxu0 0.0
      %2254 = vmatmul.mubr.f32.gmra.mxu0 %v2056
      %v2255 = vpop.f32.mrf.mxu0
      %v2256 = vadd.f32 %v1996, %v2255
      %v2257 = vpop.f32.mrf.mxu0
      %2258 = vmatprep.mubr.f32.mxu0 0.0
      %2259 = vmatmul.mubr.f32.gmra.mxu0 %v2059
      %v2260 = vpop.f32.mrf.mxu0
      %v2261 = vadd.f32 %v1996, %v2260
      %v2262 = vpop.f32.mrf.mxu0
      %2263 = vmatprep.mubr.f32.mxu0 0.0
      %2264 = vmatmul.mubr.f32.gmra.mxu0 %v2062
      %v2265 = vpop.f32.mrf.mxu0
      %v2266 = vadd.f32 %v1996, %v2265
      %v2267 = vpop.f32.mrf.mxu0
      %2268 = vmatprep.mubr.f32.mxu0 0.0
      %2269 = vmatmul.mubr.f32.gmra.mxu0 %v2065
      %v2270 = vpop.f32.mrf.mxu0
      %v2271 = vadd.f32 %v1996, %v2270
      %v2272 = vpop.f32.mrf.mxu0
      %2273 = vmatprep.mubr.f32.mxu0 0.0
      %2274 = vmatmul.mubr.f32.gmra.mxu0 %v2068
      %v2275 = vpop.f32.mrf.mxu0
      %v2276 = vadd.f32 %v1996, %v2275
      %v2277 = vpop.f32.mrf.mxu0
      %2278 = vmatprep.mubr.f32.mxu0 0.0
      %2279 = vmatmul.mubr.f32.gmra.mxu0 %v2071
      %v2280 = vpop.f32.mrf.mxu0
      %v2281 = vadd.f32 %v1996, %v2280
      %v2282 = vpop.f32.mrf.mxu0
      %2283 = vmatprep.mubr.f32.mxu0 0.0
      %2284 = vmatmul.mubr.f32.gmra.mxu0 %v2074
      %v2285 = vpop.f32.mrf.mxu0
      %v2286 = vadd.f32 %v1996, %v2285
      %v2287 = vpop.f32.mrf.mxu0
      %2288 = vmatprep.mubr.f32.mxu0 0.0
      %2289 = vmatmul.mubr.f32.gmra.mxu0 %v2077
      %v2290 = vpop.f32.mrf.mxu0
      %v2291 = vadd.f32 %v1996, %v2290
      %v2292 = vpop.f32.mrf.mxu0
      %2293 = vmatprep.mubr.f32.mxu0 0.0
      %2294 = vmatmul.mubr.f32.gmra.mxu0 %v2080
      %v2295 = vpop.f32.mrf.mxu0
      %v2296 = vadd.f32 %v1996, %v2295
      %v2297 = vpop.f32.mrf.mxu0
      %2298 = vmatprep.mubr.f32.mxu0 0.0
      %2299 = vmatmul.mubr.f32.gmra.mxu0 %v2083
      %v2300 = vpop.f32.mrf.mxu0
      %v2301 = vadd.f32 %v1996, %v2300
      %v2302 = vpop.f32.mrf.mxu0
      %2303 = vmatprep.mubr.f32.mxu0 0.0
      %2304 = vmatmul.mubr.f32.gmra.mxu0 %v2086
      %v2305 = vpop.f32.mrf.mxu0
      %v2306 = vadd.f32 %v1996, %v2305
      %v2307 = vpop.f32.mrf.mxu0
      %2308 = vmatprep.mubr.f32.mxu0 0.0
      %2309 = vmatmul.mubr.f32.gmra.mxu0 %v2089
      %v2310 = vpop.f32.mrf.mxu0
      %v2311 = vadd.f32 %v1996, %v2310
      %v2312 = vpop.f32.mrf.mxu0
      %2313 = vmatprep.mubr.f32.mxu0 0.0
      %2314 = vmatmul.mubr.f32.gmra.mxu0 %v2092
      %v2315 = vpop.f32.mrf.mxu0
      %v2316 = vadd.f32 %v1996, %v2315
      %v2317 = vpop.f32.mrf.mxu0
      %2318 = vdwg.mxu0
      %v2319 = vmax.f32 %v2161, 0.0
      %v2320 = vmax.f32 %v2166, 0.0
      %v2321 = vmax.f32 %v2171, 0.0
      %v2322 = vmax.f32 %v2176, 0.0
      %v2323 = vmax.f32 %v2181, 0.0
      %v2324 = vmax.f32 %v2186, 0.0
      %v2325 = vmax.f32 %v2191, 0.0
      %v2326 = vmax.f32 %v2196, 0.0
      %v2327 = vmax.f32 %v2201, 0.0
      %v2328 = vmax.f32 %v2206, 0.0
      %v2329 = vmax.f32 %v2211, 0.0
      %v2330 = vmax.f32 %v2216, 0.0
      %v2331 = vmax.f32 %v2221, 0.0
      %v2332 = vmax.f32 %v2226, 0.0
      %v2333 = vmax.f32 %v2231, 0.0
      %v2334 = vmax.f32 %v2236, 0.0
      %v2335 = vmax.f32 %v2241, 0.0
      %v2336 = vmax.f32 %v2246, 0.0
      %v2337 = vmax.f32 %v2251, 0.0
      %v2338 = vmax.f32 %v2256, 0.0
      %v2339 = vmax.f32 %v2261, 0.0
      %v2340 = vmax.f32 %v2266, 0.0
      %v2341 = vmax.f32 %v2271, 0.0
      %v2342 = vmax.f32 %v2276, 0.0
      %v2343 = vmax.f32 %v2281, 0.0
      %v2344 = vmax.f32 %v2286, 0.0
      %v2345 = vmax.f32 %v2291, 0.0
      %v2346 = vmax.f32 %v2296, 0.0
      %v2347 = vmax.f32 %v2301, 0.0
      %v2348 = vmax.f32 %v2306, 0.0
      %v2349 = vmax.f32 %v2311, 0.0
      %v2350 = vmax.f32 %v2316, 0.0
      %v2351 = vld [vmem:[%s7] sm:$0xff]
      %v2352 = vld [vmem:[%s7 + $0x8] sm:$0xff]
      %v2353 = vld [vmem:[%s7 + $0x10] sm:$0xff]
      %v2354 = vld [vmem:[%s7 + $0x18] sm:$0xff]
      %v2355 = vld [vmem:[%s7 + $0x20] sm:$0xff]
      %v2356 = vld [vmem:[%s7 + $0x28] sm:$0xff]
      %v2357 = vld [vmem:[%s7 + $0x30] sm:$0xff]
      %v2358 = vld [vmem:[%s7 + $0x38] sm:$0xff]
      %v2359 = vld [vmem:[%s8] sm:$0x1]
      %v2361 = vlaneseq
      %v2362 = vshrl.u32 %v2361, 7
      %v2363 = vsub.s32 0, %v2362
      %v2364 = vrot.slane %v2359, %v2363
      %v2367 = vsel %vm1629, %v2319, 0
      %v2370 = vsel %vm1629, %v2320, 0
      %v2373 = vsel %vm1629, %v2321, 0
      %v2376 = vsel %vm1629, %v2322, 0
      %v2379 = vsel %vm1629, %v2323, 0
      %v2382 = vsel %vm1629, %v2324, 0
      %v2385 = vsel %vm1629, %v2325, 0
      %v2388 = vsel %vm1629, %v2326, 0
      %v2391 = vsel %vm1629, %v2327, 0
      %v2394 = vsel %vm1629, %v2328, 0
      %v2397 = vsel %vm1629, %v2329, 0
      %v2400 = vsel %vm1629, %v2330, 0
      %v2403 = vsel %vm1629, %v2331, 0
      %v2406 = vsel %vm1629, %v2332, 0
      %v2409 = vsel %vm1629, %v2333, 0
      %v2412 = vsel %vm1629, %v2334, 0
      %v2415 = vsel %vm1629, %v2335, 0
      %v2418 = vsel %vm1629, %v2336, 0
      %v2421 = vsel %vm1629, %v2337, 0
      %v2424 = vsel %vm1629, %v2338, 0
      %v2427 = vsel %vm1629, %v2339, 0
      %v2430 = vsel %vm1629, %v2340, 0
      %v2433 = vsel %vm1629, %v2341, 0
      %v2436 = vsel %vm1629, %v2342, 0
      %v2439 = vsel %vm1629, %v2343, 0
      %v2442 = vsel %vm1629, %v2344, 0
      %v2445 = vsel %vm1629, %v2345, 0
      %v2448 = vsel %vm1629, %v2346, 0
      %v2451 = vsel %vm1629, %v2347, 0
      %v2454 = vsel %vm1629, %v2348, 0
      %v2457 = vsel %vm1629, %v2349, 0
      %v2460 = vsel %vm1629, %v2350, 0
      %2462 = vmatprep.subr.mxu0 0.0
      %2463 = vmatpush1.msra.mxu0 0.0
      %2464 = vmatprep.subr.mxu0 0.0
      %2465 = vmatpush1.msra.mxu0 0.0
      %2466 = vmatprep.subr.mxu0 0.0
      %2467 = vmatpush1.msra.mxu0 0.0
      %2468 = vmatprep.subr.mxu0 0.0
      %2469 = vmatpush1.msra.mxu0 0.0
      %2470 = vmatprep.subr.mxu0 0.0
      %2471 = vmatpush1.msra.mxu0 0.0
      %2472 = vmatprep.subr.mxu0 0.0
      %2473 = vmatpush1.msra.mxu0 0.0
      %2474 = vmatprep.subr.mxu0 0.0
      %2475 = vmatpush1.msra.mxu0 0.0
      %2476 = vmatprep.subr.mxu0 0.0
      %2477 = vmatpush1.msra.mxu0 0.0
      %2478 = vmatprep.subr.mxu0 0.0
      %2479 = vmatpush1.msra.mxu0 %v2358
      %2480 = vmatprep.subr.mxu0 0.0
      %2481 = vmatpush1.msra.mxu0 %v2357
      %2482 = vmatprep.subr.mxu0 0.0
      %2483 = vmatpush1.msra.mxu0 %v2356
      %2484 = vmatprep.subr.mxu0 0.0
      %2485 = vmatpush1.msra.mxu0 %v2355
      %2486 = vmatprep.subr.mxu0 0.0
      %2487 = vmatpush1.msra.mxu0 %v2354
      %2488 = vmatprep.subr.mxu0 0.0
      %2489 = vmatpush1.msra.mxu0 %v2353
      %2490 = vmatprep.subr.mxu0 0.0
      %2491 = vmatpush1.msra.mxu0 %v2352
      %2492 = vmatprep.subr.mxu0 0.0
      %2493 = vmatpush1.msra.mxu0 %v2351
      %2494 = vmatprep.subr.mxu0 0.0
      %2495 = vmatpush2.msra.mxu0 0.0
      %2496 = vmatprep.subr.mxu0 0.0
      %2497 = vmatpush2.msra.mxu0 0.0
      %2498 = vmatprep.subr.mxu0 0.0
      %2499 = vmatpush2.msra.mxu0 0.0
      %2500 = vmatprep.subr.mxu0 0.0
      %2501 = vmatpush2.msra.mxu0 0.0
      %2502 = vmatprep.subr.mxu0 0.0
      %2503 = vmatpush2.msra.mxu0 0.0
      %2504 = vmatprep.subr.mxu0 0.0
      %2505 = vmatpush2.msra.mxu0 0.0
      %2506 = vmatprep.subr.mxu0 0.0
      %2507 = vmatpush2.msra.mxu0 0.0
      %2508 = vmatprep.subr.mxu0 0.0
      %2509 = vmatpush2.msra.mxu0 0.0
      %2510 = vmatprep.subr.mxu0 0.0
      %2511 = vmatpush2.msra.mxu0 0.0
      %2512 = vmatprep.subr.mxu0 0.0
      %2513 = vmatpush2.msra.mxu0 0.0
      %2514 = vmatprep.subr.mxu0 0.0
      %2515 = vmatpush2.msra.mxu0 0.0
      %2516 = vmatprep.subr.mxu0 0.0
      %2517 = vmatpush2.msra.mxu0 0.0
      %2518 = vmatprep.subr.mxu0 0.0
      %2519 = vmatpush2.msra.mxu0 0.0
      %2520 = vmatprep.subr.mxu0 0.0
      %2521 = vmatpush2.msra.mxu0 0.0
      %2522 = vmatprep.subr.mxu0 0.0
      %2523 = vmatpush2.msra.mxu0 0.0
      %2524 = vmatprep.subr.mxu0 0.0
      %2525 = vmatpush2.msra.mxu0 0.0
      %2526 = vmatprep.mubr.f32.mxu0 0.0
      %2527 = vmatmul.mubr.f32.gmra.mxu0 %v2367
      %v2528 = vpop.f32.mrf.mxu0
      %v2529 = vadd.f32 %v2364, %v2528
      %v2530 = vpop.f32.mrf.mxu0
      %2531 = vmatprep.mubr.f32.mxu0 0.0
      %2532 = vmatmul.mubr.f32.gmra.mxu0 %v2370
      %v2533 = vpop.f32.mrf.mxu0
      %v2534 = vadd.f32 %v2364, %v2533
      %v2535 = vpop.f32.mrf.mxu0
      %2536 = vmatprep.mubr.f32.mxu0 0.0
      %2537 = vmatmul.mubr.f32.gmra.mxu0 %v2373
      %v2538 = vpop.f32.mrf.mxu0
      %v2539 = vadd.f32 %v2364, %v2538
      %v2540 = vpop.f32.mrf.mxu0
      %2541 = vmatprep.mubr.f32.mxu0 0.0
      %2542 = vmatmul.mubr.f32.gmra.mxu0 %v2376
      %v2543 = vpop.f32.mrf.mxu0
      %v2544 = vadd.f32 %v2364, %v2543
      %v2545 = vpop.f32.mrf.mxu0
      %2546 = vmatprep.mubr.f32.mxu0 0.0
      %2547 = vmatmul.mubr.f32.gmra.mxu0 %v2379
      %v2548 = vpop.f32.mrf.mxu0
      %v2549 = vadd.f32 %v2364, %v2548
      %v2550 = vpop.f32.mrf.mxu0
      %2551 = vmatprep.mubr.f32.mxu0 0.0
      %2552 = vmatmul.mubr.f32.gmra.mxu0 %v2382
      %v2553 = vpop.f32.mrf.mxu0
      %v2554 = vadd.f32 %v2364, %v2553
      %v2555 = vpop.f32.mrf.mxu0
      %2556 = vmatprep.mubr.f32.mxu0 0.0
      %2557 = vmatmul.mubr.f32.gmra.mxu0 %v2385
      %v2558 = vpop.f32.mrf.mxu0
      %v2559 = vadd.f32 %v2364, %v2558
      %v2560 = vpop.f32.mrf.mxu0
      %2561 = vmatprep.mubr.f32.mxu0 0.0
      %2562 = vmatmul.mubr.f32.gmra.mxu0 %v2388
      %v2563 = vpop.f32.mrf.mxu0
      %v2564 = vadd.f32 %v2364, %v2563
      %v2565 = vpop.f32.mrf.mxu0
      %2566 = vmatprep.mubr.f32.mxu0 0.0
      %2567 = vmatmul.mubr.f32.gmra.mxu0 %v2391
      %v2568 = vpop.f32.mrf.mxu0
      %v2569 = vadd.f32 %v2364, %v2568
      %v2570 = vpop.f32.mrf.mxu0
      %2571 = vmatprep.mubr.f32.mxu0 0.0
      %2572 = vmatmul.mubr.f32.gmra.mxu0 %v2394
      %v2573 = vpop.f32.mrf.mxu0
      %v2574 = vadd.f32 %v2364, %v2573
      %v2575 = vpop.f32.mrf.mxu0
      %2576 = vmatprep.mubr.f32.mxu0 0.0
      %2577 = vmatmul.mubr.f32.gmra.mxu0 %v2397
      %v2578 = vpop.f32.mrf.mxu0
      %v2579 = vadd.f32 %v2364, %v2578
      %v2580 = vpop.f32.mrf.mxu0
      %2581 = vmatprep.mubr.f32.mxu0 0.0
      %2582 = vmatmul.mubr.f32.gmra.mxu0 %v2400
      %v2583 = vpop.f32.mrf.mxu0
      %v2584 = vadd.f32 %v2364, %v2583
      %v2585 = vpop.f32.mrf.mxu0
      %2586 = vmatprep.mubr.f32.mxu0 0.0
      %2587 = vmatmul.mubr.f32.gmra.mxu0 %v2403
      %v2588 = vpop.f32.mrf.mxu0
      %v2589 = vadd.f32 %v2364, %v2588
      %v2590 = vpop.f32.mrf.mxu0
      %2591 = vmatprep.mubr.f32.mxu0 0.0
      %2592 = vmatmul.mubr.f32.gmra.mxu0 %v2406
      %v2593 = vpop.f32.mrf.mxu0
      %v2594 = vadd.f32 %v2364, %v2593
      %v2595 = vpop.f32.mrf.mxu0
      %2596 = vmatprep.mubr.f32.mxu0 0.0
      %2597 = vmatmul.mubr.f32.gmra.mxu0 %v2409
      %v2598 = vpop.f32.mrf.mxu0
      %v2599 = vadd.f32 %v2364, %v2598
      %v2600 = vpop.f32.mrf.mxu0
      %2601 = vmatprep.mubr.f32.mxu0 0.0
      %2602 = vmatmul.mubr.f32.gmra.mxu0 %v2412
      %v2603 = vpop.f32.mrf.mxu0
      %v2604 = vadd.f32 %v2364, %v2603
      %v2605 = vpop.f32.mrf.mxu0
      %2606 = vmatprep.mubr.f32.mxu0 0.0
      %2607 = vmatmul.mubr.f32.gmra.mxu0 %v2415
      %v2608 = vpop.f32.mrf.mxu0
      %v2609 = vadd.f32 %v2364, %v2608
      %v2610 = vpop.f32.mrf.mxu0
      %2611 = vmatprep.mubr.f32.mxu0 0.0
      %2612 = vmatmul.mubr.f32.gmra.mxu0 %v2418
      %v2613 = vpop.f32.mrf.mxu0
      %v2614 = vadd.f32 %v2364, %v2613
      %v2615 = vpop.f32.mrf.mxu0
      %2616 = vmatprep.mubr.f32.mxu0 0.0
      %2617 = vmatmul.mubr.f32.gmra.mxu0 %v2421
      %v2618 = vpop.f32.mrf.mxu0
      %v2619 = vadd.f32 %v2364, %v2618
      %v2620 = vpop.f32.mrf.mxu0
      %2621 = vmatprep.mubr.f32.mxu0 0.0
      %2622 = vmatmul.mubr.f32.gmra.mxu0 %v2424
      %v2623 = vpop.f32.mrf.mxu0
      %v2624 = vadd.f32 %v2364, %v2623
      %v2625 = vpop.f32.mrf.mxu0
      %2626 = vmatprep.mubr.f32.mxu0 0.0
      %2627 = vmatmul.mubr.f32.gmra.mxu0 %v2427
      %v2628 = vpop.f32.mrf.mxu0
      %v2629 = vadd.f32 %v2364, %v2628
      %v2630 = vpop.f32.mrf.mxu0
      %2631 = vmatprep.mubr.f32.mxu0 0.0
      %2632 = vmatmul.mubr.f32.gmra.mxu0 %v2430
      %v2633 = vpop.f32.mrf.mxu0
      %v2634 = vadd.f32 %v2364, %v2633
      %v2635 = vpop.f32.mrf.mxu0
      %2636 = vmatprep.mubr.f32.mxu0 0.0
      %2637 = vmatmul.mubr.f32.gmra.mxu0 %v2433
      %v2638 = vpop.f32.mrf.mxu0
      %v2639 = vadd.f32 %v2364, %v2638
      %v2640 = vpop.f32.mrf.mxu0
      %2641 = vmatprep.mubr.f32.mxu0 0.0
      %2642 = vmatmul.mubr.f32.gmra.mxu0 %v2436
      %v2643 = vpop.f32.mrf.mxu0
      %v2644 = vadd.f32 %v2364, %v2643
      %v2645 = vpop.f32.mrf.mxu0
      %2646 = vmatprep.mubr.f32.mxu0 0.0
      %2647 = vmatmul.mubr.f32.gmra.mxu0 %v2439
      %v2648 = vpop.f32.mrf.mxu0
      %v2649 = vadd.f32 %v2364, %v2648
      %v2650 = vpop.f32.mrf.mxu0
      %2651 = vmatprep.mubr.f32.mxu0 0.0
      %2652 = vmatmul.mubr.f32.gmra.mxu0 %v2442
      %v2653 = vpop.f32.mrf.mxu0
      %v2654 = vadd.f32 %v2364, %v2653
      %v2655 = vpop.f32.mrf.mxu0
      %2656 = vmatprep.mubr.f32.mxu0 0.0
      %2657 = vmatmul.mubr.f32.gmra.mxu0 %v2445
      %v2658 = vpop.f32.mrf.mxu0
      %v2659 = vadd.f32 %v2364, %v2658
      %v2660 = vpop.f32.mrf.mxu0
      %2661 = vmatprep.mubr.f32.mxu0 0.0
      %2662 = vmatmul.mubr.f32.gmra.mxu0 %v2448
      %v2663 = vpop.f32.mrf.mxu0
      %v2664 = vadd.f32 %v2364, %v2663
      %v2665 = vpop.f32.mrf.mxu0
      %2666 = vmatprep.mubr.f32.mxu0 0.0
      %2667 = vmatmul.mubr.f32.gmra.mxu0 %v2451
      %v2668 = vpop.f32.mrf.mxu0
      %v2669 = vadd.f32 %v2364, %v2668
      %v2670 = vpop.f32.mrf.mxu0
      %2671 = vmatprep.mubr.f32.mxu0 0.0
      %2672 = vmatmul.mubr.f32.gmra.mxu0 %v2454
      %v2673 = vpop.f32.mrf.mxu0
      %v2674 = vadd.f32 %v2364, %v2673
      %v2675 = vpop.f32.mrf.mxu0
      %2676 = vmatprep.mubr.f32.mxu0 0.0
      %2677 = vmatmul.mubr.f32.gmra.mxu0 %v2457
      %v2678 = vpop.f32.mrf.mxu0
      %v2679 = vadd.f32 %v2364, %v2678
      %v2680 = vpop.f32.mrf.mxu0
      %2681 = vmatprep.mubr.f32.mxu0 0.0
      %2682 = vmatmul.mubr.f32.gmra.mxu0 %v2460
      %v2683 = vpop.f32.mrf.mxu0
      %v2684 = vadd.f32 %v2364, %v2683
      %v2685 = vpop.f32.mrf.mxu0
      %2686 = vdwg.mxu0
      %2687 = vmax.xlane.f32.xlu0 %v2529
      %v2688 = vpop.xlane.xlu0 %2687
      %2689 = vmax.xlane.f32.xlu0 %v2534
      %v2690 = vpop.xlane.xlu0 %2689
      %2691 = vmax.xlane.f32.xlu0 %v2539
      %v2692 = vpop.xlane.xlu0 %2691
      %2693 = vmax.xlane.f32.xlu0 %v2544
      %v2694 = vpop.xlane.xlu0 %2693
      %2695 = vmax.xlane.f32.xlu0 %v2549
      %v2696 = vpop.xlane.xlu0 %2695
      %2697 = vmax.xlane.f32.xlu0 %v2554
      %v2698 = vpop.xlane.xlu0 %2697
      %2699 = vmax.xlane.f32.xlu0 %v2559
      %v2700 = vpop.xlane.xlu0 %2699
      %2701 = vmax.xlane.f32.xlu0 %v2564
      %v2702 = vpop.xlane.xlu0 %2701
      %2703 = vmax.xlane.f32.xlu0 %v2569
      %v2704 = vpop.xlane.xlu0 %2703
      %2705 = vmax.xlane.f32.xlu0 %v2574
      %v2706 = vpop.xlane.xlu0 %2705
      %2707 = vmax.xlane.f32.xlu0 %v2579
      %v2708 = vpop.xlane.xlu0 %2707
      %2709 = vmax.xlane.f32.xlu0 %v2584
      %v2710 = vpop.xlane.xlu0 %2709
      %2711 = vmax.xlane.f32.xlu0 %v2589
      %v2712 = vpop.xlane.xlu0 %2711
      %2713 = vmax.xlane.f32.xlu0 %v2594
      %v2714 = vpop.xlane.xlu0 %2713
      %2715 = vmax.xlane.f32.xlu0 %v2599
      %v2716 = vpop.xlane.xlu0 %2715
      %2717 = vmax.xlane.f32.xlu0 %v2604
      %v2718 = vpop.xlane.xlu0 %2717
      %2719 = vmax.xlane.f32.xlu0 %v2609
      %v2720 = vpop.xlane.xlu0 %2719
      %2721 = vmax.xlane.f32.xlu0 %v2614
      %v2722 = vpop.xlane.xlu0 %2721
      %2723 = vmax.xlane.f32.xlu0 %v2619
      %v2724 = vpop.xlane.xlu0 %2723
      %2725 = vmax.xlane.f32.xlu0 %v2624
      %v2726 = vpop.xlane.xlu0 %2725
      %2727 = vmax.xlane.f32.xlu0 %v2629
      %v2728 = vpop.xlane.xlu0 %2727
      %2729 = vmax.xlane.f32.xlu0 %v2634
      %v2730 = vpop.xlane.xlu0 %2729
      %2731 = vmax.xlane.f32.xlu0 %v2639
      %v2732 = vpop.xlane.xlu0 %2731
      %2733 = vmax.xlane.f32.xlu0 %v2644
      %v2734 = vpop.xlane.xlu0 %2733
      %2735 = vmax.xlane.f32.xlu0 %v2649
      %v2736 = vpop.xlane.xlu0 %2735
      %2737 = vmax.xlane.f32.xlu0 %v2654
      %v2738 = vpop.xlane.xlu0 %2737
      %2739 = vmax.xlane.f32.xlu0 %v2659
      %v2740 = vpop.xlane.xlu0 %2739
      %2741 = vmax.xlane.f32.xlu0 %v2664
      %v2742 = vpop.xlane.xlu0 %2741
      %2743 = vmax.xlane.f32.xlu0 %v2669
      %v2744 = vpop.xlane.xlu0 %2743
      %2745 = vmax.xlane.f32.xlu0 %v2674
      %v2746 = vpop.xlane.xlu0 %2745
      %2747 = vmax.xlane.f32.xlu0 %v2679
      %v2748 = vpop.xlane.xlu0 %2747
      %2749 = vmax.xlane.f32.xlu0 %v2684
      %v2750 = vpop.xlane.xlu0 %2749
      %v2751 = vsub.f32 %v2529, %v2688
      %v2752 = vsub.f32 %v2534, %v2690
      %v2753 = vsub.f32 %v2539, %v2692
      %v2754 = vsub.f32 %v2544, %v2694
      %v2755 = vsub.f32 %v2549, %v2696
      %v2756 = vsub.f32 %v2554, %v2698
      %v2757 = vsub.f32 %v2559, %v2700
      %v2758 = vsub.f32 %v2564, %v2702
      %v2759 = vsub.f32 %v2569, %v2704
      %v2760 = vsub.f32 %v2574, %v2706
      %v2761 = vsub.f32 %v2579, %v2708
      %v2762 = vsub.f32 %v2584, %v2710
      %v2763 = vsub.f32 %v2589, %v2712
      %v2764 = vsub.f32 %v2594, %v2714
      %v2765 = vsub.f32 %v2599, %v2716
      %v2766 = vsub.f32 %v2604, %v2718
      %v2767 = vsub.f32 %v2609, %v2720
      %v2768 = vsub.f32 %v2614, %v2722
      %v2769 = vsub.f32 %v2619, %v2724
      %v2770 = vsub.f32 %v2624, %v2726
      %v2771 = vsub.f32 %v2629, %v2728
      %v2772 = vsub.f32 %v2634, %v2730
      %v2773 = vsub.f32 %v2639, %v2732
      %v2774 = vsub.f32 %v2644, %v2734
      %v2775 = vsub.f32 %v2649, %v2736
      %v2776 = vsub.f32 %v2654, %v2738
      %v2777 = vsub.f32 %v2659, %v2740
      %v2778 = vsub.f32 %v2664, %v2742
      %v2779 = vsub.f32 %v2669, %v2744
      %v2780 = vsub.f32 %v2674, %v2746
      %v2781 = vsub.f32 %v2679, %v2748
      %v2782 = vsub.f32 %v2684, %v2750
      %v2783 = vmul.f32 %v2751, 1.442695
      %v2784 = vpow.pop %v2783
      %v2785 = vmul.f32 %v2752, 1.442695
      %v2786 = vpow.pop %v2785
      %v2787 = vmul.f32 %v2753, 1.442695
      %v2788 = vpow.pop %v2787
      %v2789 = vmul.f32 %v2754, 1.442695
      %v2790 = vpow.pop %v2789
      %v2791 = vmul.f32 %v2755, 1.442695
      %v2792 = vpow.pop %v2791
      %v2793 = vmul.f32 %v2756, 1.442695
      %v2794 = vpow.pop %v2793
      %v2795 = vmul.f32 %v2757, 1.442695
      %v2796 = vpow.pop %v2795
      %v2797 = vmul.f32 %v2758, 1.442695
      %v2798 = vpow.pop %v2797
      %v2799 = vmul.f32 %v2759, 1.442695
      %v2800 = vpow.pop %v2799
      %v2801 = vmul.f32 %v2760, 1.442695
      %v2802 = vpow.pop %v2801
      %v2803 = vmul.f32 %v2761, 1.442695
      %v2804 = vpow.pop %v2803
      %v2805 = vmul.f32 %v2762, 1.442695
      %v2806 = vpow.pop %v2805
      %v2807 = vmul.f32 %v2763, 1.442695
      %v2808 = vpow.pop %v2807
      %v2809 = vmul.f32 %v2764, 1.442695
      %v2810 = vpow.pop %v2809
      %v2811 = vmul.f32 %v2765, 1.442695
      %v2812 = vpow.pop %v2811
      %v2813 = vmul.f32 %v2766, 1.442695
      %v2814 = vpow.pop %v2813
      %v2815 = vmul.f32 %v2767, 1.442695
      %v2816 = vpow.pop %v2815
      %v2817 = vmul.f32 %v2768, 1.442695
      %v2818 = vpow.pop %v2817
      %v2819 = vmul.f32 %v2769, 1.442695
      %v2820 = vpow.pop %v2819
      %v2821 = vmul.f32 %v2770, 1.442695
      %v2822 = vpow.pop %v2821
      %v2823 = vmul.f32 %v2771, 1.442695
      %v2824 = vpow.pop %v2823
      %v2825 = vmul.f32 %v2772, 1.442695
      %v2826 = vpow.pop %v2825
      %v2827 = vmul.f32 %v2773, 1.442695
      %v2828 = vpow.pop %v2827
      %v2829 = vmul.f32 %v2774, 1.442695
      %v2830 = vpow.pop %v2829
      %v2831 = vmul.f32 %v2775, 1.442695
      %v2832 = vpow.pop %v2831
      %v2833 = vmul.f32 %v2776, 1.442695
      %v2834 = vpow.pop %v2833
      %v2835 = vmul.f32 %v2777, 1.442695
      %v2836 = vpow.pop %v2835
      %v2837 = vmul.f32 %v2778, 1.442695
      %v2838 = vpow.pop %v2837
      %v2839 = vmul.f32 %v2779, 1.442695
      %v2840 = vpow.pop %v2839
      %v2841 = vmul.f32 %v2780, 1.442695
      %v2842 = vpow.pop %v2841
      %v2843 = vmul.f32 %v2781, 1.442695
      %v2844 = vpow.pop %v2843
      %v2845 = vmul.f32 %v2782, 1.442695
      %v2846 = vpow.pop %v2845
      %2847 = vadd.xlane.f32.xlu0 %v2784
      %v2848 = vpop.xlane.xlu0 %2847
      %2849 = vadd.xlane.f32.xlu0 %v2786
      %v2850 = vpop.xlane.xlu0 %2849
      %2851 = vadd.xlane.f32.xlu0 %v2788
      %v2852 = vpop.xlane.xlu0 %2851
      %2853 = vadd.xlane.f32.xlu0 %v2790
      %v2854 = vpop.xlane.xlu0 %2853
      %2855 = vadd.xlane.f32.xlu0 %v2792
      %v2856 = vpop.xlane.xlu0 %2855
      %2857 = vadd.xlane.f32.xlu0 %v2794
      %v2858 = vpop.xlane.xlu0 %2857
      %2859 = vadd.xlane.f32.xlu0 %v2796
      %v2860 = vpop.xlane.xlu0 %2859
      %2861 = vadd.xlane.f32.xlu0 %v2798
      %v2862 = vpop.xlane.xlu0 %2861
      %2863 = vadd.xlane.f32.xlu0 %v2800
      %v2864 = vpop.xlane.xlu0 %2863
      %2865 = vadd.xlane.f32.xlu0 %v2802
      %v2866 = vpop.xlane.xlu0 %2865
      %2867 = vadd.xlane.f32.xlu0 %v2804
      %v2868 = vpop.xlane.xlu0 %2867
      %2869 = vadd.xlane.f32.xlu0 %v2806
      %v2870 = vpop.xlane.xlu0 %2869
      %2871 = vadd.xlane.f32.xlu0 %v2808
      %v2872 = vpop.xlane.xlu0 %2871
      %2873 = vadd.xlane.f32.xlu0 %v2810
      %v2874 = vpop.xlane.xlu0 %2873
      %2875 = vadd.xlane.f32.xlu0 %v2812
      %v2876 = vpop.xlane.xlu0 %2875
      %2877 = vadd.xlane.f32.xlu0 %v2814
      %v2878 = vpop.xlane.xlu0 %2877
      %2879 = vadd.xlane.f32.xlu0 %v2816
      %v2880 = vpop.xlane.xlu0 %2879
      %2881 = vadd.xlane.f32.xlu0 %v2818
      %v2882 = vpop.xlane.xlu0 %2881
      %2883 = vadd.xlane.f32.xlu0 %v2820
      %v2884 = vpop.xlane.xlu0 %2883
      %2885 = vadd.xlane.f32.xlu0 %v2822
      %v2886 = vpop.xlane.xlu0 %2885
      %2887 = vadd.xlane.f32.xlu0 %v2824
      %v2888 = vpop.xlane.xlu0 %2887
      %2889 = vadd.xlane.f32.xlu0 %v2826
      %v2890 = vpop.xlane.xlu0 %2889
      %2891 = vadd.xlane.f32.xlu0 %v2828
      %v2892 = vpop.xlane.xlu0 %2891
      %2893 = vadd.xlane.f32.xlu0 %v2830
      %v2894 = vpop.xlane.xlu0 %2893
      %2895 = vadd.xlane.f32.xlu0 %v2832
      %v2896 = vpop.xlane.xlu0 %2895
      %2897 = vadd.xlane.f32.xlu0 %v2834
      %v2898 = vpop.xlane.xlu0 %2897
      %2899 = vadd.xlane.f32.xlu0 %v2836
      %v2900 = vpop.xlane.xlu0 %2899
      %2901 = vadd.xlane.f32.xlu0 %v2838
      %v2902 = vpop.xlane.xlu0 %2901
      %2903 = vadd.xlane.f32.xlu0 %v2840
      %v2904 = vpop.xlane.xlu0 %2903
      %2905 = vadd.xlane.f32.xlu0 %v2842
      %v2906 = vpop.xlane.xlu0 %2905
      %2907 = vadd.xlane.f32.xlu0 %v2844
      %v2908 = vpop.xlane.xlu0 %2907
      %2909 = vadd.xlane.f32.xlu0 %v2846
      %v2910 = vpop.xlane.xlu0 %2909
      %v2911 = vlog2.pop %v2848
      %v2912 = vmul.f32 %v2911, 0.6931472
      %v2913 = vlog2.pop %v2850
      %v2914 = vmul.f32 %v2913, 0.6931472
      %v2915 = vlog2.pop %v2852
      %v2916 = vmul.f32 %v2915, 0.6931472
      %v2917 = vlog2.pop %v2854
      %v2918 = vmul.f32 %v2917, 0.6931472
      %v2919 = vlog2.pop %v2856
      %v2920 = vmul.f32 %v2919, 0.6931472
      %v2921 = vlog2.pop %v2858
      %v2922 = vmul.f32 %v2921, 0.6931472
      %v2923 = vlog2.pop %v2860
      %v2924 = vmul.f32 %v2923, 0.6931472
      %v2925 = vlog2.pop %v2862
      %v2926 = vmul.f32 %v2925, 0.6931472
      %v2927 = vlog2.pop %v2864
      %v2928 = vmul.f32 %v2927, 0.6931472
      %v2929 = vlog2.pop %v2866
      %v2930 = vmul.f32 %v2929, 0.6931472
      %v2931 = vlog2.pop %v2868
      %v2932 = vmul.f32 %v2931, 0.6931472
      %v2933 = vlog2.pop %v2870
      %v2934 = vmul.f32 %v2933, 0.6931472
      %v2935 = vlog2.pop %v2872
      %v2936 = vmul.f32 %v2935, 0.6931472
      %v2937 = vlog2.pop %v2874
      %v2938 = vmul.f32 %v2937, 0.6931472
      %v2939 = vlog2.pop %v2876
      %v2940 = vmul.f32 %v2939, 0.6931472
      %v2941 = vlog2.pop %v2878
      %v2942 = vmul.f32 %v2941, 0.6931472
      %v2943 = vlog2.pop %v2880
      %v2944 = vmul.f32 %v2943, 0.6931472
      %v2945 = vlog2.pop %v2882
      %v2946 = vmul.f32 %v2945, 0.6931472
      %v2947 = vlog2.pop %v2884
      %v2948 = vmul.f32 %v2947, 0.6931472
      %v2949 = vlog2.pop %v2886
      %v2950 = vmul.f32 %v2949, 0.6931472
      %v2951 = vlog2.pop %v2888
      %v2952 = vmul.f32 %v2951, 0.6931472
      %v2953 = vlog2.pop %v2890
      %v2954 = vmul.f32 %v2953, 0.6931472
      %v2955 = vlog2.pop %v2892
      %v2956 = vmul.f32 %v2955, 0.6931472
      %v2957 = vlog2.pop %v2894
      %v2958 = vmul.f32 %v2957, 0.6931472
      %v2959 = vlog2.pop %v2896
      %v2960 = vmul.f32 %v2959, 0.6931472
      %v2961 = vlog2.pop %v2898
      %v2962 = vmul.f32 %v2961, 0.6931472
      %v2963 = vlog2.pop %v2900
      %v2964 = vmul.f32 %v2963, 0.6931472
      %v2965 = vlog2.pop %v2902
      %v2966 = vmul.f32 %v2965, 0.6931472
      %v2967 = vlog2.pop %v2904
      %v2968 = vmul.f32 %v2967, 0.6931472
      %v2969 = vlog2.pop %v2906
      %v2970 = vmul.f32 %v2969, 0.6931472
      %v2971 = vlog2.pop %v2908
      %v2972 = vmul.f32 %v2971, 0.6931472
      %v2973 = vlog2.pop %v2910
      %v2974 = vmul.f32 %v2973, 0.6931472
      %v2975 = vsub.f32 %v2751, %v2912
      %v2976 = vsub.f32 %v2752, %v2914
      %v2977 = vsub.f32 %v2753, %v2916
      %v2978 = vsub.f32 %v2754, %v2918
      %v2979 = vsub.f32 %v2755, %v2920
      %v2980 = vsub.f32 %v2756, %v2922
      %v2981 = vsub.f32 %v2757, %v2924
      %v2982 = vsub.f32 %v2758, %v2926
      %v2983 = vsub.f32 %v2759, %v2928
      %v2984 = vsub.f32 %v2760, %v2930
      %v2985 = vsub.f32 %v2761, %v2932
      %v2986 = vsub.f32 %v2762, %v2934
      %v2987 = vsub.f32 %v2763, %v2936
      %v2988 = vsub.f32 %v2764, %v2938
      %v2989 = vsub.f32 %v2765, %v2940
      %v2990 = vsub.f32 %v2766, %v2942
      %v2991 = vsub.f32 %v2767, %v2944
      %v2992 = vsub.f32 %v2768, %v2946
      %v2993 = vsub.f32 %v2769, %v2948
      %v2994 = vsub.f32 %v2770, %v2950
      %v2995 = vsub.f32 %v2771, %v2952
      %v2996 = vsub.f32 %v2772, %v2954
      %v2997 = vsub.f32 %v2773, %v2956
      %v2998 = vsub.f32 %v2774, %v2958
      %v2999 = vsub.f32 %v2775, %v2960
      %v3000 = vsub.f32 %v2776, %v2962
      %v3001 = vsub.f32 %v2777, %v2964
      %v3002 = vsub.f32 %v2778, %v2966
      %v3003 = vsub.f32 %v2779, %v2968
      %v3004 = vsub.f32 %v2780, %v2970
      %v3005 = vsub.f32 %v2781, %v2972
      %v3006 = vsub.f32 %v2782, %v2974
      %3007 = vst [vmem:[%s337] sm:$0xff] %v2975
      %3008 = vst [vmem:[%s337 + $0x8] sm:$0xff] %v2976
      %3009 = vst [vmem:[%s337 + $0x10] sm:$0xff] %v2977
      %3010 = vst [vmem:[%s337 + $0x18] sm:$0xff] %v2978
      %3011 = vst [vmem:[%s337 + $0x20] sm:$0xff] %v2979
      %3012 = vst [vmem:[%s337 + $0x28] sm:$0xff] %v2980
      %3013 = vst [vmem:[%s337 + $0x30] sm:$0xff] %v2981
      %3014 = vst [vmem:[%s337 + $0x38] sm:$0xff] %v2982
      %3015 = vst [vmem:[%s337 + $0x40] sm:$0xff] %v2983
      %3016 = vst [vmem:[%s337 + $0x48] sm:$0xff] %v2984
      %3017 = vst [vmem:[%s337 + $0x50] sm:$0xff] %v2985
      %3018 = vst [vmem:[%s337 + $0x58] sm:$0xff] %v2986
      %3019 = vst [vmem:[%s337 + $0x60] sm:$0xff] %v2987
      %3020 = vst [vmem:[%s337 + $0x68] sm:$0xff] %v2988
      %3021 = vst [vmem:[%s337 + $0x70] sm:$0xff] %v2989
      %3022 = vst [vmem:[%s337 + $0x78] sm:$0xff] %v2990
      %3023 = vst [vmem:[%s337 + $0x80] sm:$0xff] %v2991
      %3024 = vst [vmem:[%s337 + $0x88] sm:$0xff] %v2992
      %3025 = vst [vmem:[%s337 + $0x90] sm:$0xff] %v2993
      %3026 = vst [vmem:[%s337 + $0x98] sm:$0xff] %v2994
      %3027 = vst [vmem:[%s337 + $0xa0] sm:$0xff] %v2995
      %3028 = vst [vmem:[%s337 + $0xa8] sm:$0xff] %v2996
      %3029 = vst [vmem:[%s337 + $0xb0] sm:$0xff] %v2997
      %3030 = vst [vmem:[%s337 + $0xb8] sm:$0xff] %v2998
      %3031 = vst [vmem:[%s337 + $0xc0] sm:$0xff] %v2999
      %3032 = vst [vmem:[%s337 + $0xc8] sm:$0xff] %v3000
      %3033 = vst [vmem:[%s337 + $0xd0] sm:$0xff] %v3001
      %3034 = vst [vmem:[%s337 + $0xd8] sm:$0xff] %v3002
      %3035 = vst [vmem:[%s337 + $0xe0] sm:$0xff] %v3003
      %3036 = vst [vmem:[%s337 + $0xe8] sm:$0xff] %v3004
      %3037 = vst [vmem:[%s337 + $0xf0] sm:$0xff] %v3005
      %3038 = vst [vmem:[%s337 + $0xf8] sm:$0xff] %v3006
      %s3039 = smul.u32 32, %s20
      %p3040 = scmp.lt.s32.totalorder %s3039, 63
      %s3041 = scalar_select %p3040, %s3039, 63
      %s3042 = smul.addr %s3041, 8
      %s3043 = scalar_lea.vmem %s9, %s3042
      // Predicated region
      $region57: #{feed_forward_network.1} parent=55 // pred_check
        %p3044 = pneg %p232
      $region58: #{feed_forward_network.1} parent=55 // pred_check_branch
        %3046 = sbr.rel (%p3044) target = $region60
      $region59: #{feed_forward_network.1} parent=55 // pred_region
        %s3047 = smul.u32 32, %s20
      $region60: #{feed_forward_network.1} parent=55 // pred_fallthru
        _
    $region56: #{feed_forward_network.1} parent=5 // pred_fallthru
      _
    %p3048 = scmp.le.s32.totalorder 2, %s15
    // Predicated region
    $region61: #{feed_forward_network.1} parent=5 // pred_check
      %p3049 = pneg %p3048
    $region62: #{feed_forward_network.1} parent=5 // pred_check_branch
      %3051 = sbr.rel (%p3049) target = $region64
    $region63: #{feed_forward_network.1} parent=5 // pred_region
      %s3052 = ssub.s32 %s15, 2
      // Predicated region
      $region65: #{feed_forward_network.1} parent=63 // pred_check
        %p3053 = pneg %p238
      $region66: #{feed_forward_network.1} parent=63 // pred_check_branch
        %3055 = sbr.rel (%p3053) target = $region68
      $region67: #{feed_forward_network.1} parent=63 // pred_region
        %s3056 = smul.u32 32, %s21
        %p3057 = scmp.lt.s32.totalorder %s3056, 63
        %s3058 = scalar_select %p3057, %s3056, 63
        %s3059 = smul.addr %s3058, 8
        %s3060 = scalar_lea.vmem %s9, %s3059
      $region68: #{feed_forward_network.1} parent=63 // pred_fallthru
        _
    $region64: #{feed_forward_network.1} parent=5 // pred_fallthru
      _
  $region6: #{feed_forward_network.1} parent=0 // loop_footer
    %s19 = sadd.s32 1, %s15
  $region7: #{feed_forward_network.1} parent=0 // loop_footer_branch
    %14 = sbr.rel target = $region3
  $region8: #{feed_forward_network.1} parent=0 // loop_exit
    _

</llo_original>
